<compile_context>
chip_gen: v6e
topology: v6e:2x2x1
jax: 0.10.0
libtpu: 0.0.40
codegen_flags: <defaults>
</compile_context>

<pallas_src>
import jax
import jax.numpy as jnp
from jax.experimental import pallas as pl
from jax.experimental.pallas import tpu as pltpu


# --------------------------------------------------------------- tile sizing

def _vmem_budget_bytes():
    """Per-pass double-buffered streaming working-set budget.

    Stays inside the default scoped-VMEM window on every generation
    (v5e 16 MiB, v6e/v7x 32 MiB scoped; v7x has only 64 MiB physical)."""
    cap = None
    try:
        cap = pltpu.get_tpu_info().vmem_capacity_bytes
    except Exception:
        cap = None
    if not cap:
        cap = 64 * 1024 * 1024
    return min(cap // 4, 12 * 1024 * 1024)


def _choose_spatial_tile(n_pad, c, dtype_bytes, n_streams, vmem_budget,
                         max_tile=2048):
    """Largest multiple-of-128 spatial tile that divides n_pad and keeps the
    double-buffered working set (n_streams big blocks) inside vmem_budget."""
    per_lane = 2 * n_streams * c * dtype_bytes          # bytes per spatial column
    t = int(vmem_budget // per_lane) // 128 * 128
    t = max(128, min(t, max_tile, n_pad))
    while t > 128 and n_pad % t != 0:                   # n_pad is a 128-multiple
        t -= 128
    return t


# ------------------------------------------------------------------ kernels

def _lane_chunk_sum(ref, n_chunks):
    """Sum a (C, tn) tile down to a (C, 128) lane-dense partial sum using only
    aligned 128-lane VPU adds (no per-step cross-lane XLU reduce)."""
    s = ref[:, 0:128].astype(jnp.float32)
    for j in range(1, n_chunks):
        s = s + ref[:, j * 128:(j + 1) * 128].astype(jnp.float32)
    return s


def _make_pool_gate_kernel(inv_n, n_chunks):
    """Fused global-average-pool of (w, x, z) + shared fc1/relu/fc2/sigmoid
    gate MLP.  Output rows per batch: [gate_w, gate_z, gate_x*(mean_x+1)]."""

    def kernel(w_ref, x_ref, z_ref, w1t_ref, w2t_ref, out_ref, acc_ref):
        k = pl.program_id(1)

        @pl.when(k == 0)
        def _init():
            acc_ref[...] = jnp.zeros_like(acc_ref)

        acc_ref[0] += _lane_chunk_sum(w_ref, n_chunks)
        acc_ref[1] += _lane_chunk_sum(x_ref, n_chunks)
        acc_ref[2] += _lane_chunk_sum(z_ref, n_chunks)

        @pl.when(k == pl.num_programs(1) - 1)
        def _finalize():
            pooled = jnp.sum(acc_ref[...], axis=-1) * inv_n              # (3, C)
            h = jnp.maximum(jnp.dot(pooled, w1t_ref[...],
                                    preferred_element_type=jnp.float32), 0.0)
            g = jax.nn.sigmoid(jnp.dot(h, w2t_ref[...],
                                       preferred_element_type=jnp.float32))
            out_ref[0:1, :] = g[0:1, :].astype(out_ref.dtype)            # gate_w
            out_ref[1:2, :] = g[2:3, :].astype(out_ref.dtype)            # gate_z
            # x path fused:  mean_sp(x*g + g) == g * (mean_sp(x) + 1)
            out_ref[2:3, :] = (g[1:2, :]
                               * (pooled[1:2, :] + 1.0)).astype(out_ref.dtype)

    return kernel


def _fused_scale_pixel_kernel(w_ref, x_ref, y_ref, gw_ref, gz_ref,
                              w1_ref, w2_ref, wout_ref, zout_ref, yout_ref):
    """Single streaming pass: w_out=(w+1)*gw ; z_out=(x+1)*gz ; per-pixel SE
    on y with a lane-dense (Cr, tn) hidden activation, y_out=(y+1)*g."""
    gw = gw_ref[...]                                       # (C, 1)
    gz = gz_ref[...]                                       # (C, 1)
    wout_ref[...] = ((w_ref[...] + 1.0) * gw).astype(wout_ref.dtype)
    zout_ref[...] = ((x_ref[...] + 1.0) * gz).astype(zout_ref.dtype)

    yv = y_ref[...]                                        # (C, tn), input dtype
    h = jnp.maximum(jnp.dot(w1_ref[...], yv,
                            preferred_element_type=jnp.float32), 0.0)    # (Cr, tn)
    g = jax.nn.sigmoid(jnp.dot(w2_ref[...], h.astype(w2_ref.dtype),
                               preferred_element_type=jnp.float32))       # (C, tn)
    yout_ref[...] = ((yv + 1.0) * g.astype(yv.dtype)).astype(yout_ref.dtype)


# ------------------------------------------------------------------ wrapper

def senet_shared_forward(w, x, y, z, w1, w2):
    """w, x, y, z: (B, C, H, W).  w1: (C//r, C) fc1 weight.  w2: (C, C//r)."""
    B, C, H, W = w.shape
    N = H * W
    Cr = w1.shape[0]
    dt = w.dtype
    db = jnp.dtype(dt).itemsize

    # lane-dense padded spatial extent (free reshape + one cheap pad if needed)
    Np = ((N + 127) // 128) * 128

    def flat(t):
        t = t.reshape(B, C, N)
        if Np != N:
            t = jnp.pad(t, ((0, 0), (0, 0), (0, Np - N)))
        return t

    w_bcn, x_bcn, y_bcn, z_bcn = flat(w), flat(x), flat(y), flat(z)
    w1t = w1.T                      # (C, Cr)  tiny
    w2t = w2.T                      # (Cr, C)  tiny

    budget = _vmem_budget_bytes()

    # ---- pass 1: global-average-pool of (w, x, z) + shared gate MLP --------
    tn1 = _choose_spatial_tile(Np, C, db, n_streams=3, vmem_budget=budget)
    nt1 = Np // tn1
    gates = pl.pallas_call(
        _make_pool_gate_kernel(1.0 / N, tn1 // 128),
        out_shape=jax.ShapeDtypeStruct((B, 3, C), dt),
        grid=(B, nt1),
        in_specs=[pl.BlockSpec((None, C, tn1), lambda b, k: (b, 0, k)),
                  pl.BlockSpec((None, C, tn1), lambda b, k: (b, 0, k)),
                  pl.BlockSpec((None, C, tn1), lambda b, k: (b, 0, k)),
                  pl.BlockSpec((C, Cr), lambda b, k: (0, 0)),
                  pl.BlockSpec((Cr, C), lambda b, k: (0, 0))],
        out_specs=pl.BlockSpec((None, 3, C), lambda b, k: (b, 0, 0)),
        scratch_shapes=[pltpu.VMEM((3, C, 128), jnp.float32)],
        compiler_params=pltpu.CompilerParams(
            dimension_semantics=("parallel", "arbitrary")),
    )(w_bcn, x_bcn, z_bcn, w1t, w2t)

    # tiny one-time relayouts outside the hot loops (gates are ~KB-sized)
    gw = gates[:, 0, :].reshape(B, C, 1)
    gz = gates[:, 1, :].reshape(B, C, 1)
    xpool = gates[:, 2, :]                                # (B, C)

    # ---- pass 2 (fused former passes 2+3): scale w, scale original x with
    # ---- the z-gate, and run the per-pixel SE on y in one streaming kernel --
    tn2 = _choose_spatial_tile(Np, C, db, n_streams=6, vmem_budget=budget)
    nt2 = Np // tn2
    w_out_p, z_out_p, y_out_p = pl.pallas_call(
        _fused_scale_pixel_kernel,
        out_shape=(jax.ShapeDtypeStruct((B, C, Np), dt),
                   jax.ShapeDtypeStruct((B, C, Np), dt),
                   jax.ShapeDtypeStruct((B, C, Np), dt)),
        grid=(B, nt2),
        in_specs=[pl.BlockSpec((None, C, tn2), lambda b, k: (b, 0, k)),
                  pl.BlockSpec((None, C, tn2), lambda b, k: (b, 0, k)),
                  pl.BlockSpec((None, C, tn2), lambda b, k: (b, 0, k)),
                  pl.BlockSpec((None, C, 1), lambda b, k: (b, 0, 0)),
                  pl.BlockSpec((None, C, 1), lambda b, k: (b, 0, 0)),
                  pl.BlockSpec((Cr, C), lambda b, k: (0, 0)),
                  pl.BlockSpec((C, Cr), lambda b, k: (0, 0))],
        out_specs=(pl.BlockSpec((None, C, tn2), lambda b, k: (b, 0, k)),
                   pl.BlockSpec((None, C, tn2), lambda b, k: (b, 0, k)),
                   pl.BlockSpec((None, C, tn2), lambda b, k: (b, 0, k))),
        compiler_params=pltpu.CompilerParams(
            dimension_semantics=("parallel", "parallel")),
    )(w_bcn, x_bcn, y_bcn, gw, gz, w1, w2)

    def unflat(t):
        if Np != N:
            t = t[:, :, :N]
        return t.reshape(B, C, H, W)

    w_out = unflat(w_out_p)
    x_out = xpool.reshape(B, C, 1, 1)        # avg_pool of the scaled x path
    y_out = unflat(y_out_p)
    z_out = unflat(z_out_p)
    return w_out, x_out, y_out, z_out


# -------------------------------------------------------- pure-JAX reference

def _ref_forward(w, x, y, z, w1, w2):
    def gate(pooled):
        h = jnp.maximum(pooled @ w1.T, 0.0)
        return jax.nn.sigmoid(h @ w2.T)

    def pool(t):
        return t.mean(axis=(2, 3))

    gw = gate(pool(w))[:, :, None, None]
    w_o = w * gw + gw

    gx = gate(pool(x))[:, :, None, None]
    x_full = x * gx + gx
    x_o = x_full.mean(axis=(2, 3), keepdims=True)

    hy = jnp.maximum(jnp.einsum('bchw,rc->brhw', y, w1), 0.0)      # fc1 per pixel
    gy = jax.nn.sigmoid(jnp.einsum('brhw,cr->bchw', hy, w2))       # fc2 per pixel
    y_o = y * gy + gy

    gz = gate(pool(z))[:, :, None, None]
    z_o = x * gz + gz                                              # ORIGINAL x
    return w_o, x_o, y_o, z_o


if __name__ == "__main__":
    inplanes, reduction = 128, 16
    B, H, W = 2, 8, 8
    Cr = inplanes // reduction

    key = jax.random.PRNGKey(0)
    kw, kx, ky, kz, k1, k2 = jax.random.split(key, 6)
    shp = (B, inplanes, H, W)
    w_in = jax.random.normal(kw, shp, jnp.float32)
    x_in = jax.random.normal(kx, shp, jnp.float32)
    y_in = jax.random.normal(ky, shp, jnp.float32)
    z_in = jax.random.normal(kz, shp, jnp.float32)

    # Conv2d 1x1, bias=False -> plain matrices
    w1 = jax.random.normal(k1, (Cr, inplanes), jnp.float32) * 0.05   # fc1 weight
    w2 = jax.random.normal(k2, (inplanes, Cr), jnp.float32) * 0.05   # fc2 weight

    outs = jax.jit(senet_shared_forward)(w_in, x_in, y_in, z_in, w1, w2)
    jax.block_until_ready(outs)

    refs = _ref_forward(w_in, x_in, y_in, z_in, w1, w2)
    for o, r in zip(outs, refs):
        assert o.shape == r.shape and o.dtype == r.dtype
        assert jnp.allclose(o, r, atol=1e-4, rtol=1e-4)

    print("KERNEL_OK")
</pallas_src>

<mosaic_0001>
module attributes {stable_mosaic.version = 11 : i64} {
  func.func @kernel(%arg0: i32, %arg1: i32, %arg2: memref<1x128x128xf32, #tpu.memory_space<vmem>>, %arg3: memref<1x128x128xf32, #tpu.memory_space<vmem>>, %arg4: memref<1x128x128xf32, #tpu.memory_space<vmem>>, %arg5: memref<128x8xf32, #tpu.memory_space<vmem>>, %arg6: memref<8x128xf32, #tpu.memory_space<vmem>>, %arg7: memref<1x3x128xf32, #tpu.memory_space<vmem>>, %arg8: memref<3x128x128xf32, #tpu.memory_space<vmem>>) attributes {dimension_semantics = [#tpu.dimension_semantics<parallel>, #tpu.dimension_semantics<arbitrary>], iteration_bounds = array<i64: 2, 1>, scalar_prefetch = 0 : i64, scratch_operands = 1 : i64, tpu.core_type = #tpu.core_type<tc>, window_params = [{transform_indices = @transform_0, window_bounds = array<i64: 1, 128, 128>}, {transform_indices = @transform_1, window_bounds = array<i64: 1, 128, 128>}, {transform_indices = @transform_2, window_bounds = array<i64: 1, 128, 128>}, {pipeline_mode = #tpu.pipeline_mode<synchronous>, transform_indices = @transform_3, window_bounds = array<i64: 128, 8>}, {pipeline_mode = #tpu.pipeline_mode<synchronous>, transform_indices = @transform_4, window_bounds = array<i64: 8, 128>}, {transform_indices = @transform_5, window_bounds = array<i64: 1, 3, 128>}]} {
    %c0_i32 = arith.constant 0 : i32
    %0 = arith.cmpi eq, %arg1, %c0_i32 : i32
    %1 = arith.extui %0 : i1 to i32
    %c0_i32_0 = arith.constant 0 : i32
    %2 = arith.cmpi ne, %1, %c0_i32_0 : i32
    scf.if %2 {
      %cst = arith.constant 0.000000e+00 : f32
      %30 = vector.broadcast %cst : f32 to vector<3x128x128xf32>
      %c0_27 = arith.constant 0 : index
      %c0_28 = arith.constant 0 : index
      %c0_29 = arith.constant 0 : index
      %31 = vector.load %arg8[%c0_27, %c0_28, %c0_29] : memref<3x128x128xf32, #tpu.memory_space<vmem>>, vector<3x128x128xf32>
      tpu.vector_store %arg8[%c0_27, %c0_28, %c0_29], %30 {strides = array<i32>} : memref<3x128x128xf32, #tpu.memory_space<vmem>>, vector<3x128x128xf32>,
    } else {
    }
    %c0 = arith.constant 0 : index
    %c0_1 = arith.constant 0 : index
    %c0_2 = arith.constant 0 : index
    %3 = vector.load %arg8[%c0, %c0_1, %c0_2] : memref<3x128x128xf32, #tpu.memory_space<vmem>>, vector<1x128x128xf32>
    %4 = vector.shape_cast %3 : vector<1x128x128xf32> to vector<128x128xf32>
    %c0_3 = arith.constant 0 : index
    %c0_4 = arith.constant 0 : index
    %c0_5 = arith.constant 0 : index
    %5 = vector.load %arg2[%c0_3, %c0_4, %c0_5] : memref<1x128x128xf32, #tpu.memory_space<vmem>>, vector<1x128x128xf32>
    %6 = vector.shape_cast %5 : vector<1x128x128xf32> to vector<128x128xf32>
    %7 = arith.addf %4, %6 : vector<128x128xf32>
    %c0_6 = arith.constant 0 : index
    %c0_7 = arith.constant 0 : index
    %c0_8 = arith.constant 0 : index
    %8 = vector.load %arg8[%c0_6, %c0_7, %c0_8] : memref<3x128x128xf32, #tpu.memory_space<vmem>>, vector<1x128x128xf32>
    %9 = vector.shape_cast %8 : vector<1x128x128xf32> to vector<128x128xf32>
    %10 = vector.shape_cast %7 : vector<128x128xf32> to vector<1x128x128xf32>
    tpu.vector_store %arg8[%c0_6, %c0_7, %c0_8], %10 {strides = array<i32>} : memref<3x128x128xf32, #tpu.memory_space<vmem>>, vector<1x128x128xf32>,
    %c1 = arith.constant 1 : index
    %c0_9 = arith.constant 0 : index
    %c0_10 = arith.constant 0 : index
    %11 = vector.load %arg8[%c1, %c0_9, %c0_10] : memref<3x128x128xf32, #tpu.memory_space<vmem>>, vector<1x128x128xf32>
    %12 = vector.shape_cast %11 : vector<1x128x128xf32> to vector<128x128xf32>
    %c0_11 = arith.constant 0 : index
    %c0_12 = arith.constant 0 : index
    %c0_13 = arith.constant 0 : index
    %13 = vector.load %arg3[%c0_11, %c0_12, %c0_13] : memref<1x128x128xf32, #tpu.memory_space<vmem>>, vector<1x128x128xf32>
    %14 = vector.shape_cast %13 : vector<1x128x128xf32> to vector<128x128xf32>
    %15 = arith.addf %12, %14 : vector<128x128xf32>
    %c1_14 = arith.constant 1 : index
    %c0_15 = arith.constant 0 : index
    %c0_16 = arith.constant 0 : index
    %16 = vector.load %arg8[%c1_14, %c0_15, %c0_16] : memref<3x128x128xf32, #tpu.memory_space<vmem>>, vector<1x128x128xf32>
    %17 = vector.shape_cast %16 : vector<1x128x128xf32> to vector<128x128xf32>
    %18 = vector.shape_cast %15 : vector<128x128xf32> to vector<1x128x128xf32>
    tpu.vector_store %arg8[%c1_14, %c0_15, %c0_16], %18 {strides = array<i32>} : memref<3x128x128xf32, #tpu.memory_space<vmem>>, vector<1x128x128xf32>,
    %c2 = arith.constant 2 : index
    %c0_17 = arith.constant 0 : index
    %c0_18 = arith.constant 0 : index
    %19 = vector.load %arg8[%c2, %c0_17, %c0_18] : memref<3x128x128xf32, #tpu.memory_space<vmem>>, vector<1x128x128xf32>
    %20 = vector.shape_cast %19 : vector<1x128x128xf32> to vector<128x128xf32>
    %c0_19 = arith.constant 0 : index
    %c0_20 = arith.constant 0 : index
    %c0_21 = arith.constant 0 : index
    %21 = vector.load %arg4[%c0_19, %c0_20, %c0_21] : memref<1x128x128xf32, #tpu.memory_space<vmem>>, vector<1x128x128xf32>
    %22 = vector.shape_cast %21 : vector<1x128x128xf32> to vector<128x128xf32>
    %23 = arith.addf %20, %22 : vector<128x128xf32>
    %c2_22 = arith.constant 2 : index
    %c0_23 = arith.constant 0 : index
    %c0_24 = arith.constant 0 : index
    %24 = vector.load %arg8[%c2_22, %c0_23, %c0_24] : memref<3x128x128xf32, #tpu.memory_space<vmem>>, vector<1x128x128xf32>
    %25 = vector.shape_cast %24 : vector<1x128x128xf32> to vector<128x128xf32>
    %26 = vector.shape_cast %23 : vector<128x128xf32> to vector<1x128x128xf32>
    tpu.vector_store %arg8[%c2_22, %c0_23, %c0_24], %26 {strides = array<i32>} : memref<3x128x128xf32, #tpu.memory_space<vmem>>, vector<1x128x128xf32>,
    %c0_i32_25 = arith.constant 0 : i32
    %27 = arith.cmpi eq, %arg1, %c0_i32_25 : i32
    %28 = arith.extui %27 : i1 to i32
    %c0_i32_26 = arith.constant 0 : i32
    %29 = arith.cmpi ne, %28, %c0_i32_26 : i32
    scf.if %29 {
      %c0_27 = arith.constant 0 : index
      %c0_28 = arith.constant 0 : index
      %c0_29 = arith.constant 0 : index
      %30 = vector.load %arg8[%c0_27, %c0_28, %c0_29] : memref<3x128x128xf32, #tpu.memory_space<vmem>>, vector<3x128x128xf32>
      %cst = arith.constant dense<0.000000e+00> : vector<3x128xf32>
      %31 = vector.multi_reduction <add>, %30, %cst [2] : vector<3x128x128xf32> to vector<3x128xf32>
      %cst_30 = arith.constant 1.562500e-02 : f32
      %32 = vector.broadcast %cst_30 : f32 to vector<3x128xf32>
      %33 = arith.mulf %31, %32 : vector<3x128xf32>
      %c0_31 = arith.constant 0 : index
      %c0_32 = arith.constant 0 : index
      %34 = vector.load %arg5[%c0_31, %c0_32] : memref<128x8xf32, #tpu.memory_space<vmem>>, vector<128x8xf32>
      %cst_33 = arith.constant dense<0.000000e+00> : vector<3x8xf32>
      %35 = tpu.matmul %33, %34, %cst_33 {dimension_numbers = #tpu.dot_dimension_numbers<[1], [0], [0], [1], [0, 0, 1, 1], [], []>} : vector<3x128xf32>, vector<128x8xf32>, vector<3x8xf32> -> vector<3x8xf32>
      %cst_34 = arith.constant 0.000000e+00 : f32
      %36 = vector.broadcast %cst_34 : f32 to vector<3x8xf32>
      %37 = arith.maximumf %35, %36 : vector<3x8xf32>
      %c0_35 = arith.constant 0 : index
      %c0_36 = arith.constant 0 : index
      %38 = vector.load %arg6[%c0_35, %c0_36] : memref<8x128xf32, #tpu.memory_space<vmem>>, vector<8x128xf32>
      %cst_37 = arith.constant dense<0.000000e+00> : vector<3x128xf32>
      %39 = tpu.matmul %37, %38, %cst_37 {dimension_numbers = #tpu.dot_dimension_numbers<[1], [0], [0], [1], [0, 0, 1, 1], [], []>} : vector<3x8xf32>, vector<8x128xf32>, vector<3x128xf32> -> vector<3x128xf32>
      %40 = arith.negf %39 : vector<3x128xf32>
      %41 = math.exp %40 : vector<3x128xf32>
      %cst_38 = arith.constant 1.000000e+00 : f32
      %42 = vector.broadcast %cst_38 : f32 to vector<3x128xf32>
      %43 = arith.addf %42, %41 : vector<3x128xf32>
      %44 = arith.divf %42, %43 : vector<3x128xf32>
      %45 = vector.extract_strided_slice %44 {offsets = [0, 0], sizes = [1, 128], strides = [1, 1]} : vector<3x128xf32> to vector<1x128xf32>
      %c0_39 = arith.constant 0 : index
      %c0_40 = arith.constant 0 : index
      %c0_41 = arith.constant 0 : index
      %46 = vector.load %arg7[%c0_39, %c0_40, %c0_41] : memref<1x3x128xf32, #tpu.memory_space<vmem>>, vector<1x1x128xf32>
      %47 = vector.shape_cast %46 : vector<1x1x128xf32> to vector<1x128xf32>
      %48 = vector.shape_cast %45 : vector<1x128xf32> to vector<1x1x128xf32>
      tpu.vector_store %arg7[%c0_39, %c0_40, %c0_41], %48 {strides = array<i32>} : memref<1x3x128xf32, #tpu.memory_space<vmem>>, vector<1x1x128xf32>,
      %49 = vector.extract_strided_slice %44 {offsets = [2, 0], sizes = [1, 128], strides = [1, 1]} : vector<3x128xf32> to vector<1x128xf32>
      %c0_42 = arith.constant 0 : index
      %c1_43 = arith.constant 1 : index
      %c0_44 = arith.constant 0 : index
      %50 = vector.load %arg7[%c0_42, %c1_43, %c0_44] : memref<1x3x128xf32, #tpu.memory_space<vmem>>, vector<1x1x128xf32>
      %51 = vector.shape_cast %50 : vector<1x1x128xf32> to vector<1x128xf32>
      %52 = vector.shape_cast %49 : vector<1x128xf32> to vector<1x1x128xf32>
      tpu.vector_store %arg7[%c0_42, %c1_43, %c0_44], %52 {strides = array<i32>} : memref<1x3x128xf32, #tpu.memory_space<vmem>>, vector<1x1x128xf32>,
      %53 = vector.extract_strided_slice %44 {offsets = [1, 0], sizes = [1, 128], strides = [1, 1]} : vector<3x128xf32> to vector<1x128xf32>
      %54 = vector.extract_strided_slice %33 {offsets = [1, 0], sizes = [1, 128], strides = [1, 1]} : vector<3x128xf32> to vector<1x128xf32>
      %cst_45 = arith.constant 1.000000e+00 : f32
      %55 = vector.broadcast %cst_45 : f32 to vector<1x128xf32>
      %56 = arith.addf %54, %55 : vector<1x128xf32>
      %57 = arith.mulf %53, %56 : vector<1x128xf32>
      %c0_46 = arith.constant 0 : index
      %c2_47 = arith.constant 2 : index
      %c0_48 = arith.constant 0 : index
      %58 = vector.load %arg7[%c0_46, %c2_47, %c0_48] : memref<1x3x128xf32, #tpu.memory_space<vmem>>, vector<1x1x128xf32>
      %59 = vector.shape_cast %58 : vector<1x1x128xf32> to vector<1x128xf32>
      %60 = vector.shape_cast %57 : vector<1x128xf32> to vector<1x1x128xf32>
      tpu.vector_store %arg7[%c0_46, %c2_47, %c0_48], %60 {strides = array<i32>} : memref<1x3x128xf32, #tpu.memory_space<vmem>>, vector<1x1x128xf32>,
    } else {
    }
    return
  }
  func.func @transform_0(%arg0: i32, %arg1: i32) -> (i32, i32, i32) {
    %c0_i32 = arith.constant 0 : i32
    %c0_i32_0 = arith.constant 0 : i32
    return %arg0, %c0_i32, %arg1 : i32, i32, i32
  }
  func.func @transform_1(%arg0: i32, %arg1: i32) -> (i32, i32, i32) {
    %c0_i32 = arith.constant 0 : i32
    %c0_i32_0 = arith.constant 0 : i32
    return %arg0, %c0_i32, %arg1 : i32, i32, i32
  }
  func.func @transform_2(%arg0: i32, %arg1: i32) -> (i32, i32, i32) {
    %c0_i32 = arith.constant 0 : i32
    %c0_i32_0 = arith.constant 0 : i32
    return %arg0, %c0_i32, %arg1 : i32, i32, i32
  }
  func.func @transform_3(%arg0: i32, %arg1: i32) -> (i32, i32) {
    %c0_i32 = arith.constant 0 : i32
    %c0_i32_0 = arith.constant 0 : i32
    %c0_i32_1 = arith.constant 0 : i32
    return %c0_i32, %c0_i32_0 : i32, i32
  }
  func.func @transform_4(%arg0: i32, %arg1: i32) -> (i32, i32) {
    %c0_i32 = arith.constant 0 : i32
    %c0_i32_0 = arith.constant 0 : i32
    %c0_i32_1 = arith.constant 0 : i32
    return %c0_i32, %c0_i32_0 : i32, i32
  }
  func.func @transform_5(%arg0: i32, %arg1: i32) -> (i32, i32, i32) {
    %c0_i32 = arith.constant 0 : i32
    %c0_i32_0 = arith.constant 0 : i32
    %c0_i32_1 = arith.constant 0 : i32
    return %arg0, %c0_i32, %c0_i32_0 : i32, i32, i32
  }
}

module attributes {stable_mosaic.version = 11 : i64} {
  func.func @_fused_scale_pixel_kernel(%arg0: i32, %arg1: i32, %arg2: memref<1x128x128xf32, #tpu.memory_space<vmem>>, %arg3: memref<1x128x128xf32, #tpu.memory_space<vmem>>, %arg4: memref<1x128x128xf32, #tpu.memory_space<vmem>>, %arg5: memref<1x128x1xf32, #tpu.memory_space<vmem>>, %arg6: memref<1x128x1xf32, #tpu.memory_space<vmem>>, %arg7: memref<8x128xf32, #tpu.memory_space<vmem>>, %arg8: memref<128x8xf32, #tpu.memory_space<vmem>>, %arg9: memref<1x128x128xf32, #tpu.memory_space<vmem>>, %arg10: memref<1x128x128xf32, #tpu.memory_space<vmem>>, %arg11: memref<1x128x128xf32, #tpu.memory_space<vmem>>) attributes {dimension_semantics = [#tpu.dimension_semantics<parallel>, #tpu.dimension_semantics<parallel>], iteration_bounds = array<i64: 2, 1>, scalar_prefetch = 0 : i64, scratch_operands = 0 : i64, tpu.core_type = #tpu.core_type<tc>, window_params = [{transform_indices = @transform_0, window_bounds = array<i64: 1, 128, 128>}, {transform_indices = @transform_1, window_bounds = array<i64: 1, 128, 128>}, {transform_indices = @transform_2, window_bounds = array<i64: 1, 128, 128>}, {transform_indices = @transform_3, window_bounds = array<i64: 1, 128, 1>}, {transform_indices = @transform_4, window_bounds = array<i64: 1, 128, 1>}, {pipeline_mode = #tpu.pipeline_mode<synchronous>, transform_indices = @transform_5, window_bounds = array<i64: 8, 128>}, {pipeline_mode = #tpu.pipeline_mode<synchronous>, transform_indices = @transform_6, window_bounds = array<i64: 128, 8>}, {transform_indices = @transform_7, window_bounds = array<i64: 1, 128, 128>}, {transform_indices = @transform_8, window_bounds = array<i64: 1, 128, 128>}, {transform_indices = @transform_9, window_bounds = array<i64: 1, 128, 128>}]} {
    %c0 = arith.constant 0 : index
    %c0_0 = arith.constant 0 : index
    %c0_1 = arith.constant 0 : index
    %0 = vector.load %arg5[%c0, %c0_0, %c0_1] : memref<1x128x1xf32, #tpu.memory_space<vmem>>, vector<1x128x1xf32>
    %1 = vector.shape_cast %0 : vector<1x128x1xf32> to vector<128x1xf32>
    %c0_2 = arith.constant 0 : index
    %c0_3 = arith.constant 0 : index
    %c0_4 = arith.constant 0 : index
    %2 = vector.load %arg6[%c0_2, %c0_3, %c0_4] : memref<1x128x1xf32, #tpu.memory_space<vmem>>, vector<1x128x1xf32>
    %3 = vector.shape_cast %2 : vector<1x128x1xf32> to vector<128x1xf32>
    %c0_5 = arith.constant 0 : index
    %c0_6 = arith.constant 0 : index
    %c0_7 = arith.constant 0 : index
    %4 = vector.load %arg2[%c0_5, %c0_6, %c0_7] : memref<1x128x128xf32, #tpu.memory_space<vmem>>, vector<1x128x128xf32>
    %5 = vector.shape_cast %4 : vector<1x128x128xf32> to vector<128x128xf32>
    %cst = arith.constant 1.000000e+00 : f32
    %6 = vector.broadcast %cst : f32 to vector<128x128xf32>
    %7 = arith.addf %5, %6 : vector<128x128xf32>
    %8 = vector.broadcast %1 : vector<128x1xf32> to vector<128x128xf32>
    %9 = arith.mulf %7, %8 : vector<128x128xf32>
    %c0_8 = arith.constant 0 : index
    %c0_9 = arith.constant 0 : index
    %c0_10 = arith.constant 0 : index
    %10 = vector.load %arg9[%c0_8, %c0_9, %c0_10] : memref<1x128x128xf32, #tpu.memory_space<vmem>>, vector<1x128x128xf32>
    %11 = vector.shape_cast %10 : vector<1x128x128xf32> to vector<128x128xf32>
    %12 = vector.shape_cast %9 : vector<128x128xf32> to vector<1x128x128xf32>
    tpu.vector_store %arg9[%c0_8, %c0_9, %c0_10], %12 {strides = array<i32>} : memref<1x128x128xf32, #tpu.memory_space<vmem>>, vector<1x128x128xf32>,
    %c0_11 = arith.constant 0 : index
    %c0_12 = arith.constant 0 : index
    %c0_13 = arith.constant 0 : index
    %13 = vector.load %arg3[%c0_11, %c0_12, %c0_13] : memref<1x128x128xf32, #tpu.memory_space<vmem>>, vector<1x128x128xf32>
    %14 = vector.shape_cast %13 : vector<1x128x128xf32> to vector<128x128xf32>
    %cst_14 = arith.constant 1.000000e+00 : f32
    %15 = vector.broadcast %cst_14 : f32 to vector<128x128xf32>
    %16 = arith.addf %14, %15 : vector<128x128xf32>
    %17 = vector.broadcast %3 : vector<128x1xf32> to vector<128x128xf32>
    %18 = arith.mulf %16, %17 : vector<128x128xf32>
    %c0_15 = arith.constant 0 : index
    %c0_16 = arith.constant 0 : index
    %c0_17 = arith.constant 0 : index
    %19 = vector.load %arg10[%c0_15, %c0_16, %c0_17] : memref<1x128x128xf32, #tpu.memory_space<vmem>>, vector<1x128x128xf32>
    %20 = vector.shape_cast %19 : vector<1x128x128xf32> to vector<128x128xf32>
    %21 = vector.shape_cast %18 : vector<128x128xf32> to vector<1x128x128xf32>
    tpu.vector_store %arg10[%c0_15, %c0_16, %c0_17], %21 {strides = array<i32>} : memref<1x128x128xf32, #tpu.memory_space<vmem>>, vector<1x128x128xf32>,
    %c0_18 = arith.constant 0 : index
    %c0_19 = arith.constant 0 : index
    %c0_20 = arith.constant 0 : index
    %22 = vector.load %arg4[%c0_18, %c0_19, %c0_20] : memref<1x128x128xf32, #tpu.memory_space<vmem>>, vector<1x128x128xf32>
    %23 = vector.shape_cast %22 : vector<1x128x128xf32> to vector<128x128xf32>
    %c0_21 = arith.constant 0 : index
    %c0_22 = arith.constant 0 : index
    %24 = vector.load %arg7[%c0_21, %c0_22] : memref<8x128xf32, #tpu.memory_space<vmem>>, vector<8x128xf32>
    %cst_23 = arith.constant dense<0.000000e+00> : vector<8x128xf32>
    %25 = tpu.matmul %24, %23, %cst_23 {dimension_numbers = #tpu.dot_dimension_numbers<[1], [0], [0], [1], [0, 0, 1, 1], [], []>} : vector<8x128xf32>, vector<128x128xf32>, vector<8x128xf32> -> vector<8x128xf32>
    %cst_24 = arith.constant 0.000000e+00 : f32
    %26 = vector.broadcast %cst_24 : f32 to vector<8x128xf32>
    %27 = arith.maximumf %25, %26 : vector<8x128xf32>
    %c0_25 = arith.constant 0 : index
    %c0_26 = arith.constant 0 : index
    %28 = vector.load %arg8[%c0_25, %c0_26] : memref<128x8xf32, #tpu.memory_space<vmem>>, vector<128x8xf32>
    %cst_27 = arith.constant dense<0.000000e+00> : vector<128x128xf32>
    %29 = tpu.matmul %28, %27, %cst_27 {dimension_numbers = #tpu.dot_dimension_numbers<[1], [0], [0], [1], [0, 0, 1, 1], [], []>} : vector<128x8xf32>, vector<8x128xf32>, vector<128x128xf32> -> vector<128x128xf32>
    %30 = arith.negf %29 : vector<128x128xf32>
    %31 = math.exp %30 : vector<128x128xf32>
    %cst_28 = arith.constant 1.000000e+00 : f32
    %32 = vector.broadcast %cst_28 : f32 to vector<128x128xf32>
    %33 = arith.addf %32, %31 : vector<128x128xf32>
    %34 = arith.divf %32, %33 : vector<128x128xf32>
    %cst_29 = arith.constant 1.000000e+00 : f32
    %35 = vector.broadcast %cst_29 : f32 to vector<128x128xf32>
    %36 = arith.addf %23, %35 : vector<128x128xf32>
    %37 = arith.mulf %36, %34 : vector<128x128xf32>
    %c0_30 = arith.constant 0 : index
    %c0_31 = arith.constant 0 : index
    %c0_32 = arith.constant 0 : index
    %38 = vector.load %arg11[%c0_30, %c0_31, %c0_32] : memref<1x128x128xf32, #tpu.memory_space<vmem>>, vector<1x128x128xf32>
    %39 = vector.shape_cast %38 : vector<1x128x128xf32> to vector<128x128xf32>
    %40 = vector.shape_cast %37 : vector<128x128xf32> to vector<1x128x128xf32>
    tpu.vector_store %arg11[%c0_30, %c0_31, %c0_32], %40 {strides = array<i32>} : memref<1x128x128xf32, #tpu.memory_space<vmem>>, vector<1x128x128xf32>,
    return
  }
  func.func @transform_0(%arg0: i32, %arg1: i32) -> (i32, i32, i32) {
    %c0_i32 = arith.constant 0 : i32
    %c0_i32_0 = arith.constant 0 : i32
    return %arg0, %c0_i32, %arg1 : i32, i32, i32
  }
  func.func @transform_1(%arg0: i32, %arg1: i32) -> (i32, i32, i32) {
    %c0_i32 = arith.constant 0 : i32
    %c0_i32_0 = arith.constant 0 : i32
    return %arg0, %c0_i32, %arg1 : i32, i32, i32
  }
  func.func @transform_2(%arg0: i32, %arg1: i32) -> (i32, i32, i32) {
    %c0_i32 = arith.constant 0 : i32
    %c0_i32_0 = arith.constant 0 : i32
    return %arg0, %c0_i32, %arg1 : i32, i32, i32
  }
  func.func @transform_3(%arg0: i32, %arg1: i32) -> (i32, i32, i32) {
    %c0_i32 = arith.constant 0 : i32
    %c0_i32_0 = arith.constant 0 : i32
    %c0_i32_1 = arith.constant 0 : i32
    return %arg0, %c0_i32, %c0_i32_0 : i32, i32, i32
  }
  func.func @transform_4(%arg0: i32, %arg1: i32) -> (i32, i32, i32) {
    %c0_i32 = arith.constant 0 : i32
    %c0_i32_0 = arith.constant 0 : i32
    %c0_i32_1 = arith.constant 0 : i32
    return %arg0, %c0_i32, %c0_i32_0 : i32, i32, i32
  }
  func.func @transform_5(%arg0: i32, %arg1: i32) -> (i32, i32) {
    %c0_i32 = arith.constant 0 : i32
    %c0_i32_0 = arith.constant 0 : i32
    %c0_i32_1 = arith.constant 0 : i32
    return %c0_i32, %c0_i32_0 : i32, i32
  }
  func.func @transform_6(%arg0: i32, %arg1: i32) -> (i32, i32) {
    %c0_i32 = arith.constant 0 : i32
    %c0_i32_0 = arith.constant 0 : i32
    %c0_i32_1 = arith.constant 0 : i32
    return %c0_i32, %c0_i32_0 : i32, i32
  }
  func.func @transform_7(%arg0: i32, %arg1: i32) -> (i32, i32, i32) {
    %c0_i32 = arith.constant 0 : i32
    %c0_i32_0 = arith.constant 0 : i32
    return %arg0, %c0_i32, %arg1 : i32, i32, i32
  }
  func.func @transform_8(%arg0: i32, %arg1: i32) -> (i32, i32, i32) {
    %c0_i32 = arith.constant 0 : i32
    %c0_i32_0 = arith.constant 0 : i32
    return %arg0, %c0_i32, %arg1 : i32, i32, i32
  }
  func.func @transform_9(%arg0: i32, %arg1: i32) -> (i32, i32, i32) {
    %c0_i32 = arith.constant 0 : i32
    %c0_i32_0 = arith.constant 0 : i32
    return %arg0, %c0_i32, %arg1 : i32, i32, i32
  }
}

</mosaic_0001>

<llo_original>
// kernel: senet_shared_forward.2
$region0: #{senet_shared_forward.2}
  #allocation0 [shape = 'u32[]', space=smem, size = 0x4, offset = 0x4, fixed_abs, tag = 'smem constant byte address 0x4 - core index']
  #allocation1 [shape = 'u32[144,128]{1,0:T(1,128)}', space=vmem, size = 0x12000, scoped, tag = 'internal scratch']
  #allocation2 [shape = 'f32[3,128,128]{2,1,0:T(8,128)}', space=vmem, size = 0x30000, scoped, tag = 'scratch operand']
  %s0 = inlined_call_operand.vmem [shape: f32[2,128,128], index: 0, kind: input, shape index: {}]
  %s1 = inlined_call_operand.vmem [shape: f32[2,128,128], index: 1, kind: input, shape index: {}]
  %s2 = inlined_call_operand.vmem [shape: f32[2,128,128], index: 2, kind: input, shape index: {}]
  %s3 = inlined_call_operand.vmem [shape: f32[128,8], index: 3, kind: input, shape index: {}]
  %s4 = inlined_call_operand.vmem [shape: f32[8,128], index: 4, kind: input, shape index: {}]
  %s5 = inlined_call_operand.vmem [shape: f32[2,3,128], index: 5, kind: output, shape index: {}]
  %s6 = sld [smem:[#allocation0]]
  $region61: #{senet_shared_forward.2} parent=0
    _
  %s8 = ssub.s32 1, %s6
  %s9 = scalar_select 0, %s8, %s6
  loop: start=0, step=1, limit=4
  $region2: #{senet_shared_forward.2} parent=0 // loop_pre_header
    _
  $region3: #{senet_shared_forward.2} parent=0 // loop_header
    %s11 = sphi 0, %s15
    %p12 = scmp.ge.s32.totalorder %s11, 4
    %s18 = sphi 0, %s30
    %s19 = sphi 0, %s26
    %s20 = sphi 0, %s18
    %s21 = sphi 0, %s19
    %s22 = sphi 0, %s20
    %s23 = sphi 0, %s21
    %s35 = sphi 0, %s37
    %s38 = sphi 0, %s35
    %s39 = sphi 0, %s38
    %s55 = sphi 0, %s39
    %s63 = sphi 0, %s65
    %s66 = sphi 0, %s63
    %s67 = sphi 0, %s66
    %s83 = sphi 0, %s67
    %s91 = sphi 0, %s93
    %s94 = sphi 0, %s91
    %s95 = sphi 0, %s94
    %s111 = sphi 0, %s95
    %s115 = sphi 0, %s115
    %s117 = sphi 0, %s115
    %s118 = sphi 0, %s117
    %s132 = sphi 0, %s118
    %s136 = sphi 0, %s136
    %s138 = sphi 0, %s136
    %s139 = sphi 0, %s138
    %s153 = sphi 0, %s139
    %s159 = sphi 0, %s161
    %s162 = sphi 0, %s159
    %s163 = sphi 0, %s162
    %s179 = sphi 0, %s163
  $region4: #{senet_shared_forward.2} parent=0 // loop_header_branch
    %14 = sbr.rel (%p12) target = $region8
  $region5: #{senet_shared_forward.2} parent=0 // loop_body
    %s16 = ssub.s32 %s11, 1
    %s17 = ssub.s32 %s11, 2
    %s24 = sadd.s32 1, %s19
    %p25 = scmp.ge.s32.totalorder %s24, 1
    %s26 = scalar_select %p25, 0, %s24
    %s27 = sadd.s32 1, %s18
    %s28 = scalar_select %p25, %s27, %s18
    %p29 = scmp.ge.s32.totalorder %s28, 2
    %s30 = scalar_select %p29, 0, %s28
    %s31 = ssub.s32 %s18, %s30
    %s32 = ssub.s32 %s19, %s26
    %s33 = sor.u32 %s31, %s32
    %p34 = scmp.eq.s32.totalorder %s33, 0
    %s36 = sadd.s32 %s35, 1
    %s37 = scalar_select %p34, %s35, %s36
    %p40 = pneg %p34
    %p41 = scmp.eq.s32.totalorder %s11, 1
    %p42 = por %p40, %p41
    %p43 = scmp.ne.s32.totalorder %s35, %s38
    %p44 = scmp.eq.s32.totalorder %s11, 0
    %p45 = por %p43, %p44
    %p46 = scmp.ne.s32.totalorder %s35, %s38
    %p47 = scmp.eq.s32.totalorder %s16, 1
    %p48 = por %p46, %p47
    %p49 = scmp.ne.s32.totalorder %s38, %s39
    %p50 = scmp.eq.s32.totalorder %s16, 0
    %p51 = por %p49, %p50
    %p52 = scmp.ne.s32.totalorder %s38, %s39
    %p53 = scmp.eq.s32.totalorder %s17, 1
    %p54 = por %p52, %p53
    %p56 = scmp.ne.s32.totalorder %s39, %s55
    %p57 = scmp.eq.s32.totalorder %s17, 0
    %p58 = por %p56, %p57
    %s59 = ssub.s32 %s18, %s30
    %s60 = ssub.s32 %s19, %s26
    %s61 = sor.u32 %s59, %s60
    %p62 = scmp.eq.s32.totalorder %s61, 0
    %s64 = sadd.s32 %s63, 1
    %s65 = scalar_select %p62, %s63, %s64
    %p68 = pneg %p62
    %p69 = scmp.eq.s32.totalorder %s11, 1
    %p70 = por %p68, %p69
    %p71 = scmp.ne.s32.totalorder %s63, %s66
    %p72 = scmp.eq.s32.totalorder %s11, 0
    %p73 = por %p71, %p72
    %p74 = scmp.ne.s32.totalorder %s63, %s66
    %p75 = scmp.eq.s32.totalorder %s16, 1
    %p76 = por %p74, %p75
    %p77 = scmp.ne.s32.totalorder %s66, %s67
    %p78 = scmp.eq.s32.totalorder %s16, 0
    %p79 = por %p77, %p78
    %p80 = scmp.ne.s32.totalorder %s66, %s67
    %p81 = scmp.eq.s32.totalorder %s17, 1
    %p82 = por %p80, %p81
    %p84 = scmp.ne.s32.totalorder %s67, %s83
    %p85 = scmp.eq.s32.totalorder %s17, 0
    %p86 = por %p84, %p85
    %s87 = ssub.s32 %s18, %s30
    %s88 = ssub.s32 %s19, %s26
    %s89 = sor.u32 %s87, %s88
    %p90 = scmp.eq.s32.totalorder %s89, 0
    %s92 = sadd.s32 %s91, 1
    %s93 = scalar_select %p90, %s91, %s92
    %p96 = pneg %p90
    %p97 = scmp.eq.s32.totalorder %s11, 1
    %p98 = por %p96, %p97
    %p99 = scmp.ne.s32.totalorder %s91, %s94
    %p100 = scmp.eq.s32.totalorder %s11, 0
    %p101 = por %p99, %p100
    %p102 = scmp.ne.s32.totalorder %s91, %s94
    %p103 = scmp.eq.s32.totalorder %s16, 1
    %p104 = por %p102, %p103
    %p105 = scmp.ne.s32.totalorder %s94, %s95
    %p106 = scmp.eq.s32.totalorder %s16, 0
    %p107 = por %p105, %p106
    %p108 = scmp.ne.s32.totalorder %s94, %s95
    %p109 = scmp.eq.s32.totalorder %s17, 1
    %p110 = por %p108, %p109
    %p112 = scmp.ne.s32.totalorder %s95, %s111
    %p113 = scmp.eq.s32.totalorder %s17, 0
    %p114 = por %p112, %p113
    %s116 = sadd.s32 %s115, 1
    %p119 = scmp.eq.s32.totalorder %s11, 1
    %p120 = scmp.ne.s32.totalorder %s115, %s117
    %p121 = scmp.eq.s32.totalorder %s11, 0
    %p122 = por %p120, %p121
    %p123 = scmp.ne.s32.totalorder %s115, %s117
    %p124 = scmp.eq.s32.totalorder %s16, 1
    %p125 = por %p123, %p124
    %p126 = scmp.ne.s32.totalorder %s117, %s118
    %p127 = scmp.eq.s32.totalorder %s16, 0
    %p128 = por %p126, %p127
    %p129 = scmp.ne.s32.totalorder %s117, %s118
    %p130 = scmp.eq.s32.totalorder %s17, 1
    %p131 = por %p129, %p130
    %p133 = scmp.ne.s32.totalorder %s118, %s132
    %p134 = scmp.eq.s32.totalorder %s17, 0
    %p135 = por %p133, %p134
    %s137 = sadd.s32 %s136, 1
    %p140 = scmp.eq.s32.totalorder %s11, 1
    %p141 = scmp.ne.s32.totalorder %s136, %s138
    %p142 = scmp.eq.s32.totalorder %s11, 0
    %p143 = por %p141, %p142
    %p144 = scmp.ne.s32.totalorder %s136, %s138
    %p145 = scmp.eq.s32.totalorder %s16, 1
    %p146 = por %p144, %p145
    %p147 = scmp.ne.s32.totalorder %s138, %s139
    %p148 = scmp.eq.s32.totalorder %s16, 0
    %p149 = por %p147, %p148
    %p150 = scmp.ne.s32.totalorder %s138, %s139
    %p151 = scmp.eq.s32.totalorder %s17, 1
    %p152 = por %p150, %p151
    %p154 = scmp.ne.s32.totalorder %s139, %s153
    %p155 = scmp.eq.s32.totalorder %s17, 0
    %p156 = por %p154, %p155
    %s157 = ssub.s32 %s18, %s30
    %p158 = scmp.eq.s32.totalorder %s157, 0
    %s160 = sadd.s32 %s159, 1
    %s161 = scalar_select %p158, %s159, %s160
    %p164 = pneg %p158
    %p165 = scmp.eq.s32.totalorder %s11, 1
    %p166 = por %p164, %p165
    %p167 = scmp.ne.s32.totalorder %s159, %s162
    %p168 = scmp.eq.s32.totalorder %s11, 0
    %p169 = por %p167, %p168
    %p170 = scmp.ne.s32.totalorder %s159, %s162
    %p171 = scmp.eq.s32.totalorder %s16, 1
    %p172 = por %p170, %p171
    %p173 = scmp.ne.s32.totalorder %s162, %s163
    %p174 = scmp.eq.s32.totalorder %s16, 0
    %p175 = por %p173, %p174
    %p176 = scmp.ne.s32.totalorder %s162, %s163
    %p177 = scmp.eq.s32.totalorder %s17, 1
    %p178 = por %p176, %p177
    %p180 = scmp.ne.s32.totalorder %s163, %s179
    %p181 = scmp.eq.s32.totalorder %s17, 0
    %p182 = por %p180, %p181
    %p183 = scmp.le.s32.totalorder 1, %s11
    %p184 = scmp.lt.s32.totalorder %s11, 3
    %p185 = pnand %p183, %p184
    %p186 = pneg %p185
    // Predicated region
    $region9: #{senet_shared_forward.2} parent=5 // pred_check
      _
    $region10: #{senet_shared_forward.2} parent=5 // pred_check_branch
      %188 = sbr.rel (%p185) target = $region12
    $region11: #{senet_shared_forward.2} parent=5 // pred_region
      %s189 = ssub.s32 %s11, 1
      // Predicated region
      $region13: #{senet_shared_forward.2} parent=11 // pred_check
        %p190 = pneg %p128
      $region14: #{senet_shared_forward.2} parent=11 // pred_check_branch
        %192 = sbr.rel (%p190) target = $region16
      $region15: #{senet_shared_forward.2} parent=11 // pred_region
        _
      $region16: #{senet_shared_forward.2} parent=11 // pred_fallthru
        _
      // Predicated region
      $region17: #{senet_shared_forward.2} parent=11 // pred_check
        %p193 = pneg %p149
      $region18: #{senet_shared_forward.2} parent=11 // pred_check_branch
        %195 = sbr.rel (%p193) target = $region20
      $region19: #{senet_shared_forward.2} parent=11 // pred_region
        _
      $region20: #{senet_shared_forward.2} parent=11 // pred_fallthru
        _
    $region12: #{senet_shared_forward.2} parent=5 // pred_fallthru
      _
    %p196 = scmp.lt.s32.totalorder %s11, 2
    // Predicated region
    $region21: #{senet_shared_forward.2} parent=5 // pred_check
      %p197 = pneg %p196
    $region22: #{senet_shared_forward.2} parent=5 // pred_check_branch
      %199 = sbr.rel (%p197) target = $region24
    $region23: #{senet_shared_forward.2} parent=5 // pred_region
      // Predicated region
      $region25: #{senet_shared_forward.2} parent=23 // pred_check
        %p200 = pneg %p45
      $region26: #{senet_shared_forward.2} parent=23 // pred_check_branch
        %202 = sbr.rel (%p200) target = $region28
      $region27: #{senet_shared_forward.2} parent=23 // pred_region
        %p203 = scmp.lt.s32.totalorder %s18, 1
        %s204 = scalar_select %p203, %s18, 1
        %p205 = scmp.lt.s32.totalorder %s19, 0
        %s206 = scalar_select %p205, %s19, 0
        %s207 = smul.addr %s204, 16
        %s208 = sadd.s32 %s206, %s207
        %s209 = smul.addr %s208, 8
        %s210 = scalar_lea.vmem %s0, %s209
      $region28: #{senet_shared_forward.2} parent=23 // pred_fallthru
        _
      // Predicated region
      $region29: #{senet_shared_forward.2} parent=23 // pred_check
        %p211 = pneg %p73
      $region30: #{senet_shared_forward.2} parent=23 // pred_check_branch
        %213 = sbr.rel (%p211) target = $region32
      $region31: #{senet_shared_forward.2} parent=23 // pred_region
        %p214 = scmp.lt.s32.totalorder %s18, 1
        %s215 = scalar_select %p214, %s18, 1
        %p216 = scmp.lt.s32.totalorder %s19, 0
        %s217 = scalar_select %p216, %s19, 0
        %s218 = smul.addr %s215, 16
        %s219 = sadd.s32 %s217, %s218
        %s220 = smul.addr %s219, 8
        %s221 = scalar_lea.vmem %s1, %s220
      $region32: #{senet_shared_forward.2} parent=23 // pred_fallthru
        _
      // Predicated region
      $region33: #{senet_shared_forward.2} parent=23 // pred_check
        %p222 = pneg %p101
      $region34: #{senet_shared_forward.2} parent=23 // pred_check_branch
        %224 = sbr.rel (%p222) target = $region36
      $region35: #{senet_shared_forward.2} parent=23 // pred_region
        %p225 = scmp.lt.s32.totalorder %s18, 1
        %s226 = scalar_select %p225, %s18, 1
        %p227 = scmp.lt.s32.totalorder %s19, 0
        %s228 = scalar_select %p227, %s19, 0
        %s229 = smul.addr %s226, 16
        %s230 = sadd.s32 %s228, %s229
        %s231 = smul.addr %s230, 8
        %s232 = scalar_lea.vmem %s2, %s231
      $region36: #{senet_shared_forward.2} parent=23 // pred_fallthru
        _
    $region24: #{senet_shared_forward.2} parent=5 // pred_fallthru
      _
    %p233 = scmp.le.s32.totalorder 1, %s11
    %p234 = scmp.lt.s32.totalorder %s11, 3
    %p235 = pnand %p233, %p234
    %p236 = pneg %p235
    // Predicated region
    $region37: #{senet_shared_forward.2} parent=5 // pred_check
      _
    $region38: #{senet_shared_forward.2} parent=5 // pred_check_branch
      %238 = sbr.rel (%p235) target = $region40
    $region39: #{senet_shared_forward.2} parent=5 // pred_region
      %s239 = ssub.s32 %s11, 1
      %p240 = scmp.lt.s32.totalorder %s20, 1
      %s241 = scalar_select %p240, %s20, 1
      %p242 = scmp.lt.s32.totalorder %s21, 0
      %s243 = scalar_select %p242, %s21, 0
      %s244 = smul.addr %s241, 16
      %s245 = sadd.s32 %s243, %s244
      %s246 = smul.addr %s245, 8
      %s247 = scalar_lea.vmem %s0, %s246
      %p248 = pneg %p51
      %p249 = pneg %p48
      %p250 = scmp.lt.s32.totalorder %s20, 1
      %s251 = scalar_select %p250, %s20, 1
      %p252 = scmp.lt.s32.totalorder %s21, 0
      %s253 = scalar_select %p252, %s21, 0
      %s254 = smul.addr %s251, 16
      %s255 = sadd.s32 %s253, %s254
      %s256 = smul.addr %s255, 8
      %s257 = scalar_lea.vmem %s1, %s256
      %p258 = pneg %p79
      %p259 = pneg %p76
      %p260 = scmp.lt.s32.totalorder %s20, 1
      %s261 = scalar_select %p260, %s20, 1
      %p262 = scmp.lt.s32.totalorder %s21, 0
      %s263 = scalar_select %p262, %s21, 0
      %s264 = smul.addr %s261, 16
      %s265 = sadd.s32 %s263, %s264
      %s266 = smul.addr %s265, 8
      %s267 = scalar_lea.vmem %s2, %s266
      %p268 = pneg %p107
      %p269 = pneg %p104
      %p270 = pneg %p128
      %p271 = pneg %p125
      %p272 = pneg %p149
      %p273 = pneg %p146
      %p274 = pneg %p175
      %p275 = pneg %p172
      %p276 = scmp.lt.s32.totalorder %s20, 1
      %s277 = scalar_select %p276, %s20, 1
      %s278 = smul.addr %s277, 4
      %s279 = scalar_lea.vmem %s5, %s278
      %p280 = scmp.lt.s32.totalorder %s20, 1
      %s281 = scalar_select %p280, %s20, 1
      %p282 = scmp.lt.s32.totalorder %s21, 0
      %s283 = scalar_select %p282, %s21, 0
      %s284 = smul.addr %s281, 16
      %s285 = sadd.s32 %s283, %s284
      %s286 = smul.addr %s285, 8
      %s287 = scalar_lea.vmem %s0, %s286
      %p288 = scmp.lt.s32.totalorder %s20, 1
      %s289 = scalar_select %p288, %s20, 1
      %p290 = scmp.lt.s32.totalorder %s21, 0
      %s291 = scalar_select %p290, %s21, 0
      %s292 = smul.addr %s289, 16
      %s293 = sadd.s32 %s291, %s292
      %s294 = smul.addr %s293, 8
      %s295 = scalar_lea.vmem %s1, %s294
      %p296 = scmp.lt.s32.totalorder %s20, 1
      %s297 = scalar_select %p296, %s20, 1
      %p298 = scmp.lt.s32.totalorder %s21, 0
      %s299 = scalar_select %p298, %s21, 0
      %s300 = smul.addr %s297, 16
      %s301 = sadd.s32 %s299, %s300
      %s302 = smul.addr %s301, 8
      %s303 = scalar_lea.vmem %s2, %s302
      %p304 = scmp.lt.s32.totalorder %s20, 1
      %s305 = scalar_select %p304, %s20, 1
      %s306 = smul.addr %s305, 4
      %s307 = scalar_lea.vmem %s5, %s306
      %p308 = scmp.eq.s32.totalorder %s21, 0
      // Predicated region
      $region41: #{senet_shared_forward.2} parent=39 // pred_check
        %p309 = pneg %p308
      $region42: #{senet_shared_forward.2} parent=39 // pred_check_branch
        %311 = sbr.rel (%p309) target = $region44
      $region43: #{senet_shared_forward.2} parent=39 // pred_region
        %312 = vst [vmem:[#allocation2] sm:$0xff] 0.0
        %313 = vst [vmem:[#allocation2 + $0x8] sm:$0xff] 0.0
        %314 = vst [vmem:[#allocation2 + $0x10] sm:$0xff] 0.0
        %315 = vst [vmem:[#allocation2 + $0x18] sm:$0xff] 0.0
        %316 = vst [vmem:[#allocation2 + $0x20] sm:$0xff] 0.0
        %317 = vst [vmem:[#allocation2 + $0x28] sm:$0xff] 0.0
        %318 = vst [vmem:[#allocation2 + $0x30] sm:$0xff] 0.0
        %319 = vst [vmem:[#allocation2 + $0x38] sm:$0xff] 0.0
        %320 = vst [vmem:[#allocation2 + $0x40] sm:$0xff] 0.0
        %321 = vst [vmem:[#allocation2 + $0x48] sm:$0xff] 0.0
        %322 = vst [vmem:[#allocation2 + $0x50] sm:$0xff] 0.0
        %323 = vst [vmem:[#allocation2 + $0x58] sm:$0xff] 0.0
        %324 = vst [vmem:[#allocation2 + $0x60] sm:$0xff] 0.0
        %325 = vst [vmem:[#allocation2 + $0x68] sm:$0xff] 0.0
        %326 = vst [vmem:[#allocation2 + $0x70] sm:$0xff] 0.0
        %327 = vst [vmem:[#allocation2 + $0x78] sm:$0xff] 0.0
        %328 = vst [vmem:[#allocation2 + $0x80] sm:$0xff] 0.0
        %329 = vst [vmem:[#allocation2 + $0x88] sm:$0xff] 0.0
        %330 = vst [vmem:[#allocation2 + $0x90] sm:$0xff] 0.0
        %331 = vst [vmem:[#allocation2 + $0x98] sm:$0xff] 0.0
        %332 = vst [vmem:[#allocation2 + $0xa0] sm:$0xff] 0.0
        %333 = vst [vmem:[#allocation2 + $0xa8] sm:$0xff] 0.0
        %334 = vst [vmem:[#allocation2 + $0xb0] sm:$0xff] 0.0
        %335 = vst [vmem:[#allocation2 + $0xb8] sm:$0xff] 0.0
        %336 = vst [vmem:[#allocation2 + $0xc0] sm:$0xff] 0.0
        %337 = vst [vmem:[#allocation2 + $0xc8] sm:$0xff] 0.0
        %338 = vst [vmem:[#allocation2 + $0xd0] sm:$0xff] 0.0
        %339 = vst [vmem:[#allocation2 + $0xd8] sm:$0xff] 0.0
        %340 = vst [vmem:[#allocation2 + $0xe0] sm:$0xff] 0.0
        %341 = vst [vmem:[#allocation2 + $0xe8] sm:$0xff] 0.0
        %342 = vst [vmem:[#allocation2 + $0xf0] sm:$0xff] 0.0
        %343 = vst [vmem:[#allocation2 + $0xf8] sm:$0xff] 0.0
        %344 = vst [vmem:[#allocation2 + $0x100] sm:$0xff] 0.0
        %345 = vst [vmem:[#allocation2 + $0x108] sm:$0xff] 0.0
        %346 = vst [vmem:[#allocation2 + $0x110] sm:$0xff] 0.0
        %347 = vst [vmem:[#allocation2 + $0x118] sm:$0xff] 0.0
        %348 = vst [vmem:[#allocation2 + $0x120] sm:$0xff] 0.0
        %349 = vst [vmem:[#allocation2 + $0x128] sm:$0xff] 0.0
        %350 = vst [vmem:[#allocation2 + $0x130] sm:$0xff] 0.0
        %351 = vst [vmem:[#allocation2 + $0x138] sm:$0xff] 0.0
        %352 = vst [vmem:[#allocation2 + $0x140] sm:$0xff] 0.0
        %353 = vst [vmem:[#allocation2 + $0x148] sm:$0xff] 0.0
        %354 = vst [vmem:[#allocation2 + $0x150] sm:$0xff] 0.0
        %355 = vst [vmem:[#allocation2 + $0x158] sm:$0xff] 0.0
        %356 = vst [vmem:[#allocation2 + $0x160] sm:$0xff] 0.0
        %357 = vst [vmem:[#allocation2 + $0x168] sm:$0xff] 0.0
        %358 = vst [vmem:[#allocation2 + $0x170] sm:$0xff] 0.0
        %359 = vst [vmem:[#allocation2 + $0x178] sm:$0xff] 0.0
      $region44: #{senet_shared_forward.2} parent=39 // pred_fallthru
        _
      %v360 = vld [vmem:[#allocation2] sm:$0xff]
      %v361 = vld [vmem:[#allocation2 + $0x8] sm:$0xff]
      %v362 = vld [vmem:[#allocation2 + $0x10] sm:$0xff]
      %v363 = vld [vmem:[#allocation2 + $0x18] sm:$0xff]
      %v364 = vld [vmem:[#allocation2 + $0x20] sm:$0xff]
      %v365 = vld [vmem:[#allocation2 + $0x28] sm:$0xff]
      %v366 = vld [vmem:[#allocation2 + $0x30] sm:$0xff]
      %v367 = vld [vmem:[#allocation2 + $0x38] sm:$0xff]
      %v368 = vld [vmem:[#allocation2 + $0x40] sm:$0xff]
      %v369 = vld [vmem:[#allocation2 + $0x48] sm:$0xff]
      %v370 = vld [vmem:[#allocation2 + $0x50] sm:$0xff]
      %v371 = vld [vmem:[#allocation2 + $0x58] sm:$0xff]
      %v372 = vld [vmem:[#allocation2 + $0x60] sm:$0xff]
      %v373 = vld [vmem:[#allocation2 + $0x68] sm:$0xff]
      %v374 = vld [vmem:[#allocation2 + $0x70] sm:$0xff]
      %v375 = vld [vmem:[#allocation2 + $0x78] sm:$0xff]
      %v376 = vld [vmem:[%s287] sm:$0xff]
      %v377 = vld [vmem:[%s287 + $0x8] sm:$0xff]
      %v378 = vld [vmem:[%s287 + $0x10] sm:$0xff]
      %v379 = vld [vmem:[%s287 + $0x18] sm:$0xff]
      %v380 = vld [vmem:[%s287 + $0x20] sm:$0xff]
      %v381 = vld [vmem:[%s287 + $0x28] sm:$0xff]
      %v382 = vld [vmem:[%s287 + $0x30] sm:$0xff]
      %v383 = vld [vmem:[%s287 + $0x38] sm:$0xff]
      %v384 = vld [vmem:[%s287 + $0x40] sm:$0xff]
      %v385 = vld [vmem:[%s287 + $0x48] sm:$0xff]
      %v386 = vld [vmem:[%s287 + $0x50] sm:$0xff]
      %v387 = vld [vmem:[%s287 + $0x58] sm:$0xff]
      %v388 = vld [vmem:[%s287 + $0x60] sm:$0xff]
      %v389 = vld [vmem:[%s287 + $0x68] sm:$0xff]
      %v390 = vld [vmem:[%s287 + $0x70] sm:$0xff]
      %v391 = vld [vmem:[%s287 + $0x78] sm:$0xff]
      %v392 = vadd.f32 %v360, %v376
      %v393 = vadd.f32 %v361, %v377
      %v394 = vadd.f32 %v362, %v378
      %v395 = vadd.f32 %v363, %v379
      %v396 = vadd.f32 %v364, %v380
      %v397 = vadd.f32 %v365, %v381
      %v398 = vadd.f32 %v366, %v382
      %v399 = vadd.f32 %v367, %v383
      %v400 = vadd.f32 %v368, %v384
      %v401 = vadd.f32 %v369, %v385
      %v402 = vadd.f32 %v370, %v386
      %v403 = vadd.f32 %v371, %v387
      %v404 = vadd.f32 %v372, %v388
      %v405 = vadd.f32 %v373, %v389
      %v406 = vadd.f32 %v374, %v390
      %v407 = vadd.f32 %v375, %v391
      %408 = vst [vmem:[#allocation2] sm:$0xff] %v392
      %409 = vst [vmem:[#allocation2 + $0x8] sm:$0xff] %v393
      %410 = vst [vmem:[#allocation2 + $0x10] sm:$0xff] %v394
      %411 = vst [vmem:[#allocation2 + $0x18] sm:$0xff] %v395
      %412 = vst [vmem:[#allocation2 + $0x20] sm:$0xff] %v396
      %413 = vst [vmem:[#allocation2 + $0x28] sm:$0xff] %v397
      %414 = vst [vmem:[#allocation2 + $0x30] sm:$0xff] %v398
      %415 = vst [vmem:[#allocation2 + $0x38] sm:$0xff] %v399
      %416 = vst [vmem:[#allocation2 + $0x40] sm:$0xff] %v400
      %417 = vst [vmem:[#allocation2 + $0x48] sm:$0xff] %v401
      %418 = vst [vmem:[#allocation2 + $0x50] sm:$0xff] %v402
      %419 = vst [vmem:[#allocation2 + $0x58] sm:$0xff] %v403
      %420 = vst [vmem:[#allocation2 + $0x60] sm:$0xff] %v404
      %421 = vst [vmem:[#allocation2 + $0x68] sm:$0xff] %v405
      %422 = vst [vmem:[#allocation2 + $0x70] sm:$0xff] %v406
      %423 = vst [vmem:[#allocation2 + $0x78] sm:$0xff] %v407
      %s424 = scalar_lea.vmem [#allocation2], 128
      %v425 = vld [vmem:[%s424] sm:$0xff]
      %v426 = vld [vmem:[%s424 + $0x8] sm:$0xff]
      %v427 = vld [vmem:[%s424 + $0x10] sm:$0xff]
      %v428 = vld [vmem:[%s424 + $0x18] sm:$0xff]
      %v429 = vld [vmem:[%s424 + $0x20] sm:$0xff]
      %v430 = vld [vmem:[%s424 + $0x28] sm:$0xff]
      %v431 = vld [vmem:[%s424 + $0x30] sm:$0xff]
      %v432 = vld [vmem:[%s424 + $0x38] sm:$0xff]
      %v433 = vld [vmem:[%s424 + $0x40] sm:$0xff]
      %v434 = vld [vmem:[%s424 + $0x48] sm:$0xff]
      %v435 = vld [vmem:[%s424 + $0x50] sm:$0xff]
      %v436 = vld [vmem:[%s424 + $0x58] sm:$0xff]
      %v437 = vld [vmem:[%s424 + $0x60] sm:$0xff]
      %v438 = vld [vmem:[%s424 + $0x68] sm:$0xff]
      %v439 = vld [vmem:[%s424 + $0x70] sm:$0xff]
      %v440 = vld [vmem:[%s424 + $0x78] sm:$0xff]
      %v441 = vld [vmem:[%s295] sm:$0xff]
      %v442 = vld [vmem:[%s295 + $0x8] sm:$0xff]
      %v443 = vld [vmem:[%s295 + $0x10] sm:$0xff]
      %v444 = vld [vmem:[%s295 + $0x18] sm:$0xff]
      %v445 = vld [vmem:[%s295 + $0x20] sm:$0xff]
      %v446 = vld [vmem:[%s295 + $0x28] sm:$0xff]
      %v447 = vld [vmem:[%s295 + $0x30] sm:$0xff]
      %v448 = vld [vmem:[%s295 + $0x38] sm:$0xff]
      %v449 = vld [vmem:[%s295 + $0x40] sm:$0xff]
      %v450 = vld [vmem:[%s295 + $0x48] sm:$0xff]
      %v451 = vld [vmem:[%s295 + $0x50] sm:$0xff]
      %v452 = vld [vmem:[%s295 + $0x58] sm:$0xff]
      %v453 = vld [vmem:[%s295 + $0x60] sm:$0xff]
      %v454 = vld [vmem:[%s295 + $0x68] sm:$0xff]
      %v455 = vld [vmem:[%s295 + $0x70] sm:$0xff]
      %v456 = vld [vmem:[%s295 + $0x78] sm:$0xff]
      %v457 = vadd.f32 %v425, %v441
      %v458 = vadd.f32 %v426, %v442
      %v459 = vadd.f32 %v427, %v443
      %v460 = vadd.f32 %v428, %v444
      %v461 = vadd.f32 %v429, %v445
      %v462 = vadd.f32 %v430, %v446
      %v463 = vadd.f32 %v431, %v447
      %v464 = vadd.f32 %v432, %v448
      %v465 = vadd.f32 %v433, %v449
      %v466 = vadd.f32 %v434, %v450
      %v467 = vadd.f32 %v435, %v451
      %v468 = vadd.f32 %v436, %v452
      %v469 = vadd.f32 %v437, %v453
      %v470 = vadd.f32 %v438, %v454
      %v471 = vadd.f32 %v439, %v455
      %v472 = vadd.f32 %v440, %v456
      %473 = vst [vmem:[%s424] sm:$0xff] %v457
      %474 = vst [vmem:[%s424 + $0x8] sm:$0xff] %v458
      %475 = vst [vmem:[%s424 + $0x10] sm:$0xff] %v459
      %476 = vst [vmem:[%s424 + $0x18] sm:$0xff] %v460
      %477 = vst [vmem:[%s424 + $0x20] sm:$0xff] %v461
      %478 = vst [vmem:[%s424 + $0x28] sm:$0xff] %v462
      %479 = vst [vmem:[%s424 + $0x30] sm:$0xff] %v463
      %480 = vst [vmem:[%s424 + $0x38] sm:$0xff] %v464
      %481 = vst [vmem:[%s424 + $0x40] sm:$0xff] %v465
      %482 = vst [vmem:[%s424 + $0x48] sm:$0xff] %v466
      %483 = vst [vmem:[%s424 + $0x50] sm:$0xff] %v467
      %484 = vst [vmem:[%s424 + $0x58] sm:$0xff] %v468
      %485 = vst [vmem:[%s424 + $0x60] sm:$0xff] %v469
      %486 = vst [vmem:[%s424 + $0x68] sm:$0xff] %v470
      %487 = vst [vmem:[%s424 + $0x70] sm:$0xff] %v471
      %488 = vst [vmem:[%s424 + $0x78] sm:$0xff] %v472
      %s489 = scalar_lea.vmem [#allocation2], 256
      %v490 = vld [vmem:[%s489] sm:$0xff]
      %v491 = vld [vmem:[%s489 + $0x8] sm:$0xff]
      %v492 = vld [vmem:[%s489 + $0x10] sm:$0xff]
      %v493 = vld [vmem:[%s489 + $0x18] sm:$0xff]
      %v494 = vld [vmem:[%s489 + $0x20] sm:$0xff]
      %v495 = vld [vmem:[%s489 + $0x28] sm:$0xff]
      %v496 = vld [vmem:[%s489 + $0x30] sm:$0xff]
      %v497 = vld [vmem:[%s489 + $0x38] sm:$0xff]
      %v498 = vld [vmem:[%s489 + $0x40] sm:$0xff]
      %v499 = vld [vmem:[%s489 + $0x48] sm:$0xff]
      %v500 = vld [vmem:[%s489 + $0x50] sm:$0xff]
      %v501 = vld [vmem:[%s489 + $0x58] sm:$0xff]
      %v502 = vld [vmem:[%s489 + $0x60] sm:$0xff]
      %v503 = vld [vmem:[%s489 + $0x68] sm:$0xff]
      %v504 = vld [vmem:[%s489 + $0x70] sm:$0xff]
      %v505 = vld [vmem:[%s489 + $0x78] sm:$0xff]
      %v506 = vld [vmem:[%s303] sm:$0xff]
      %v507 = vld [vmem:[%s303 + $0x8] sm:$0xff]
      %v508 = vld [vmem:[%s303 + $0x10] sm:$0xff]
      %v509 = vld [vmem:[%s303 + $0x18] sm:$0xff]
      %v510 = vld [vmem:[%s303 + $0x20] sm:$0xff]
      %v511 = vld [vmem:[%s303 + $0x28] sm:$0xff]
      %v512 = vld [vmem:[%s303 + $0x30] sm:$0xff]
      %v513 = vld [vmem:[%s303 + $0x38] sm:$0xff]
      %v514 = vld [vmem:[%s303 + $0x40] sm:$0xff]
      %v515 = vld [vmem:[%s303 + $0x48] sm:$0xff]
      %v516 = vld [vmem:[%s303 + $0x50] sm:$0xff]
      %v517 = vld [vmem:[%s303 + $0x58] sm:$0xff]
      %v518 = vld [vmem:[%s303 + $0x60] sm:$0xff]
      %v519 = vld [vmem:[%s303 + $0x68] sm:$0xff]
      %v520 = vld [vmem:[%s303 + $0x70] sm:$0xff]
      %v521 = vld [vmem:[%s303 + $0x78] sm:$0xff]
      %v522 = vadd.f32 %v490, %v506
      %v523 = vadd.f32 %v491, %v507
      %v524 = vadd.f32 %v492, %v508
      %v525 = vadd.f32 %v493, %v509
      %v526 = vadd.f32 %v494, %v510
      %v527 = vadd.f32 %v495, %v511
      %v528 = vadd.f32 %v496, %v512
      %v529 = vadd.f32 %v497, %v513
      %v530 = vadd.f32 %v498, %v514
      %v531 = vadd.f32 %v499, %v515
      %v532 = vadd.f32 %v500, %v516
      %v533 = vadd.f32 %v501, %v517
      %v534 = vadd.f32 %v502, %v518
      %v535 = vadd.f32 %v503, %v519
      %v536 = vadd.f32 %v504, %v520
      %v537 = vadd.f32 %v505, %v521
      %538 = vst [vmem:[%s489] sm:$0xff] %v522
      %539 = vst [vmem:[%s489 + $0x8] sm:$0xff] %v523
      %540 = vst [vmem:[%s489 + $0x10] sm:$0xff] %v524
      %541 = vst [vmem:[%s489 + $0x18] sm:$0xff] %v525
      %542 = vst [vmem:[%s489 + $0x20] sm:$0xff] %v526
      %543 = vst [vmem:[%s489 + $0x28] sm:$0xff] %v527
      %544 = vst [vmem:[%s489 + $0x30] sm:$0xff] %v528
      %545 = vst [vmem:[%s489 + $0x38] sm:$0xff] %v529
      %546 = vst [vmem:[%s489 + $0x40] sm:$0xff] %v530
      %547 = vst [vmem:[%s489 + $0x48] sm:$0xff] %v531
      %548 = vst [vmem:[%s489 + $0x50] sm:$0xff] %v532
      %549 = vst [vmem:[%s489 + $0x58] sm:$0xff] %v533
      %550 = vst [vmem:[%s489 + $0x60] sm:$0xff] %v534
      %551 = vst [vmem:[%s489 + $0x68] sm:$0xff] %v535
      %552 = vst [vmem:[%s489 + $0x70] sm:$0xff] %v536
      %553 = vst [vmem:[%s489 + $0x78] sm:$0xff] %v537
      // Predicated region
      $region45: #{senet_shared_forward.2} parent=39 // pred_check
        %p554 = pneg %p308
      $region46: #{senet_shared_forward.2} parent=39 // pred_check_branch
        %556 = sbr.rel (%p554) target = $region48
      $region47: #{senet_shared_forward.2} parent=39 // pred_region
        %v557 = vld [vmem:[#allocation2] sm:$0xff]
        %v558 = vld [vmem:[#allocation2 + $0x8] sm:$0xff]
        %v559 = vld [vmem:[#allocation2 + $0x10] sm:$0xff]
        %v560 = vld [vmem:[#allocation2 + $0x18] sm:$0xff]
        %v561 = vld [vmem:[#allocation2 + $0x20] sm:$0xff]
        %v562 = vld [vmem:[#allocation2 + $0x28] sm:$0xff]
        %v563 = vld [vmem:[#allocation2 + $0x30] sm:$0xff]
        %v564 = vld [vmem:[#allocation2 + $0x38] sm:$0xff]
        %v565 = vld [vmem:[#allocation2 + $0x40] sm:$0xff]
        %v566 = vld [vmem:[#allocation2 + $0x48] sm:$0xff]
        %v567 = vld [vmem:[#allocation2 + $0x50] sm:$0xff]
        %v568 = vld [vmem:[#allocation2 + $0x58] sm:$0xff]
        %v569 = vld [vmem:[#allocation2 + $0x60] sm:$0xff]
        %v570 = vld [vmem:[#allocation2 + $0x68] sm:$0xff]
        %v571 = vld [vmem:[#allocation2 + $0x70] sm:$0xff]
        %v572 = vld [vmem:[#allocation2 + $0x78] sm:$0xff]
        %v573 = vld [vmem:[#allocation2 + $0x80] sm:$0xff]
        %v574 = vld [vmem:[#allocation2 + $0x88] sm:$0xff]
        %v575 = vld [vmem:[#allocation2 + $0x90] sm:$0xff]
        %v576 = vld [vmem:[#allocation2 + $0x98] sm:$0xff]
        %v577 = vld [vmem:[#allocation2 + $0xa0] sm:$0xff]
        %v578 = vld [vmem:[#allocation2 + $0xa8] sm:$0xff]
        %v579 = vld [vmem:[#allocation2 + $0xb0] sm:$0xff]
        %v580 = vld [vmem:[#allocation2 + $0xb8] sm:$0xff]
        %v581 = vld [vmem:[#allocation2 + $0xc0] sm:$0xff]
        %v582 = vld [vmem:[#allocation2 + $0xc8] sm:$0xff]
        %v583 = vld [vmem:[#allocation2 + $0xd0] sm:$0xff]
        %v584 = vld [vmem:[#allocation2 + $0xd8] sm:$0xff]
        %v585 = vld [vmem:[#allocation2 + $0xe0] sm:$0xff]
        %v586 = vld [vmem:[#allocation2 + $0xe8] sm:$0xff]
        %v587 = vld [vmem:[#allocation2 + $0xf0] sm:$0xff]
        %v588 = vld [vmem:[#allocation2 + $0xf8] sm:$0xff]
        %v589 = vld [vmem:[#allocation2 + $0x100] sm:$0xff]
        %v590 = vld [vmem:[#allocation2 + $0x108] sm:$0xff]
        %v591 = vld [vmem:[#allocation2 + $0x110] sm:$0xff]
        %v592 = vld [vmem:[#allocation2 + $0x118] sm:$0xff]
        %v593 = vld [vmem:[#allocation2 + $0x120] sm:$0xff]
        %v594 = vld [vmem:[#allocation2 + $0x128] sm:$0xff]
        %v595 = vld [vmem:[#allocation2 + $0x130] sm:$0xff]
        %v596 = vld [vmem:[#allocation2 + $0x138] sm:$0xff]
        %v597 = vld [vmem:[#allocation2 + $0x140] sm:$0xff]
        %v598 = vld [vmem:[#allocation2 + $0x148] sm:$0xff]
        %v599 = vld [vmem:[#allocation2 + $0x150] sm:$0xff]
        %v600 = vld [vmem:[#allocation2 + $0x158] sm:$0xff]
        %v601 = vld [vmem:[#allocation2 + $0x160] sm:$0xff]
        %v602 = vld [vmem:[#allocation2 + $0x168] sm:$0xff]
        %v603 = vld [vmem:[#allocation2 + $0x170] sm:$0xff]
        %v604 = vld [vmem:[#allocation2 + $0x178] sm:$0xff]
        %605 = vadd.xlane.f32.xlu0 %v557
        %v606 = vpop.xlane.xlu0 %605
        %607 = vadd.xlane.f32.xlu0 %v558
        %v608 = vpop.xlane.xlu0 %607
        %609 = vadd.xlane.f32.xlu0 %v559
        %v610 = vpop.xlane.xlu0 %609
        %611 = vadd.xlane.f32.xlu0 %v560
        %v612 = vpop.xlane.xlu0 %611
        %613 = vadd.xlane.f32.xlu0 %v561
        %v614 = vpop.xlane.xlu0 %613
        %615 = vadd.xlane.f32.xlu0 %v562
        %v616 = vpop.xlane.xlu0 %615
        %617 = vadd.xlane.f32.xlu0 %v563
        %v618 = vpop.xlane.xlu0 %617
        %619 = vadd.xlane.f32.xlu0 %v564
        %v620 = vpop.xlane.xlu0 %619
        %621 = vadd.xlane.f32.xlu0 %v565
        %v622 = vpop.xlane.xlu0 %621
        %623 = vadd.xlane.f32.xlu0 %v566
        %v624 = vpop.xlane.xlu0 %623
        %625 = vadd.xlane.f32.xlu0 %v567
        %v626 = vpop.xlane.xlu0 %625
        %627 = vadd.xlane.f32.xlu0 %v568
        %v628 = vpop.xlane.xlu0 %627
        %629 = vadd.xlane.f32.xlu0 %v569
        %v630 = vpop.xlane.xlu0 %629
        %631 = vadd.xlane.f32.xlu0 %v570
        %v632 = vpop.xlane.xlu0 %631
        %633 = vadd.xlane.f32.xlu0 %v571
        %v634 = vpop.xlane.xlu0 %633
        %635 = vadd.xlane.f32.xlu0 %v572
        %v636 = vpop.xlane.xlu0 %635
        %637 = vadd.xlane.f32.xlu0 %v573
        %v638 = vpop.xlane.xlu0 %637
        %639 = vadd.xlane.f32.xlu0 %v574
        %v640 = vpop.xlane.xlu0 %639
        %641 = vadd.xlane.f32.xlu0 %v575
        %v642 = vpop.xlane.xlu0 %641
        %643 = vadd.xlane.f32.xlu0 %v576
        %v644 = vpop.xlane.xlu0 %643
        %645 = vadd.xlane.f32.xlu0 %v577
        %v646 = vpop.xlane.xlu0 %645
        %647 = vadd.xlane.f32.xlu0 %v578
        %v648 = vpop.xlane.xlu0 %647
        %649 = vadd.xlane.f32.xlu0 %v579
        %v650 = vpop.xlane.xlu0 %649
        %651 = vadd.xlane.f32.xlu0 %v580
        %v652 = vpop.xlane.xlu0 %651
        %653 = vadd.xlane.f32.xlu0 %v581
        %v654 = vpop.xlane.xlu0 %653
        %655 = vadd.xlane.f32.xlu0 %v582
        %v656 = vpop.xlane.xlu0 %655
        %657 = vadd.xlane.f32.xlu0 %v583
        %v658 = vpop.xlane.xlu0 %657
        %659 = vadd.xlane.f32.xlu0 %v584
        %v660 = vpop.xlane.xlu0 %659
        %661 = vadd.xlane.f32.xlu0 %v585
        %v662 = vpop.xlane.xlu0 %661
        %663 = vadd.xlane.f32.xlu0 %v586
        %v664 = vpop.xlane.xlu0 %663
        %665 = vadd.xlane.f32.xlu0 %v587
        %v666 = vpop.xlane.xlu0 %665
        %667 = vadd.xlane.f32.xlu0 %v588
        %v668 = vpop.xlane.xlu0 %667
        %669 = vadd.xlane.f32.xlu0 %v589
        %v670 = vpop.xlane.xlu0 %669
        %671 = vadd.xlane.f32.xlu0 %v590
        %v672 = vpop.xlane.xlu0 %671
        %673 = vadd.xlane.f32.xlu0 %v591
        %v674 = vpop.xlane.xlu0 %673
        %675 = vadd.xlane.f32.xlu0 %v592
        %v676 = vpop.xlane.xlu0 %675
        %677 = vadd.xlane.f32.xlu0 %v593
        %v678 = vpop.xlane.xlu0 %677
        %679 = vadd.xlane.f32.xlu0 %v594
        %v680 = vpop.xlane.xlu0 %679
        %681 = vadd.xlane.f32.xlu0 %v595
        %v682 = vpop.xlane.xlu0 %681
        %683 = vadd.xlane.f32.xlu0 %v596
        %v684 = vpop.xlane.xlu0 %683
        %685 = vadd.xlane.f32.xlu0 %v597
        %v686 = vpop.xlane.xlu0 %685
        %687 = vadd.xlane.f32.xlu0 %v598
        %v688 = vpop.xlane.xlu0 %687
        %689 = vadd.xlane.f32.xlu0 %v599
        %v690 = vpop.xlane.xlu0 %689
        %691 = vadd.xlane.f32.xlu0 %v600
        %v692 = vpop.xlane.xlu0 %691
        %693 = vadd.xlane.f32.xlu0 %v601
        %v694 = vpop.xlane.xlu0 %693
        %695 = vadd.xlane.f32.xlu0 %v602
        %v696 = vpop.xlane.xlu0 %695
        %697 = vadd.xlane.f32.xlu0 %v603
        %v698 = vpop.xlane.xlu0 %697
        %699 = vadd.xlane.f32.xlu0 %v604
        %v700 = vpop.xlane.xlu0 %699
        %v701 = vmul.f32 %v606, 0.015625
        %v702 = vmul.f32 %v608, 0.015625
        %v703 = vmul.f32 %v610, 0.015625
        %v704 = vmul.f32 %v612, 0.015625
        %v705 = vmul.f32 %v614, 0.015625
        %v706 = vmul.f32 %v616, 0.015625
        %v707 = vmul.f32 %v618, 0.015625
        %v708 = vmul.f32 %v620, 0.015625
        %v709 = vmul.f32 %v622, 0.015625
        %v710 = vmul.f32 %v624, 0.015625
        %v711 = vmul.f32 %v626, 0.015625
        %v712 = vmul.f32 %v628, 0.015625
        %v713 = vmul.f32 %v630, 0.015625
        %v714 = vmul.f32 %v632, 0.015625
        %v715 = vmul.f32 %v634, 0.015625
        %v716 = vmul.f32 %v636, 0.015625
        %v717 = vmul.f32 %v638, 0.015625
        %v718 = vmul.f32 %v640, 0.015625
        %v719 = vmul.f32 %v642, 0.015625
        %v720 = vmul.f32 %v644, 0.015625
        %v721 = vmul.f32 %v646, 0.015625
        %v722 = vmul.f32 %v648, 0.015625
        %v723 = vmul.f32 %v650, 0.015625
        %v724 = vmul.f32 %v652, 0.015625
        %v725 = vmul.f32 %v654, 0.015625
        %v726 = vmul.f32 %v656, 0.015625
        %v727 = vmul.f32 %v658, 0.015625
        %v728 = vmul.f32 %v660, 0.015625
        %v729 = vmul.f32 %v662, 0.015625
        %v730 = vmul.f32 %v664, 0.015625
        %v731 = vmul.f32 %v666, 0.015625
        %v732 = vmul.f32 %v668, 0.015625
        %v733 = vmul.f32 %v670, 0.015625
        %v734 = vmul.f32 %v672, 0.015625
        %v735 = vmul.f32 %v674, 0.015625
        %v736 = vmul.f32 %v676, 0.015625
        %v737 = vmul.f32 %v678, 0.015625
        %v738 = vmul.f32 %v680, 0.015625
        %v739 = vmul.f32 %v682, 0.015625
        %v740 = vmul.f32 %v684, 0.015625
        %v741 = vmul.f32 %v686, 0.015625
        %v742 = vmul.f32 %v688, 0.015625
        %v743 = vmul.f32 %v690, 0.015625
        %v744 = vmul.f32 %v692, 0.015625
        %v745 = vmul.f32 %v694, 0.015625
        %v746 = vmul.f32 %v696, 0.015625
        %v747 = vmul.f32 %v698, 0.015625
        %v748 = vmul.f32 %v700, 0.015625
        %v749 = vld [vmem:[%s3] sm:$0xff]
        %v750 = vld [vmem:[%s3 + $0x8] sm:$0xff]
        %v751 = vld [vmem:[%s3 + $0x10] sm:$0xff]
        %v752 = vld [vmem:[%s3 + $0x18] sm:$0xff]
        %v753 = vld [vmem:[%s3 + $0x20] sm:$0xff]
        %v754 = vld [vmem:[%s3 + $0x28] sm:$0xff]
        %v755 = vld [vmem:[%s3 + $0x30] sm:$0xff]
        %v756 = vld [vmem:[%s3 + $0x38] sm:$0xff]
        %v757 = vld [vmem:[%s3 + $0x40] sm:$0xff]
        %v758 = vld [vmem:[%s3 + $0x48] sm:$0xff]
        %v759 = vld [vmem:[%s3 + $0x50] sm:$0xff]
        %v760 = vld [vmem:[%s3 + $0x58] sm:$0xff]
        %v761 = vld [vmem:[%s3 + $0x60] sm:$0xff]
        %v762 = vld [vmem:[%s3 + $0x68] sm:$0xff]
        %v763 = vld [vmem:[%s3 + $0x70] sm:$0xff]
        %v764 = vld [vmem:[%s3 + $0x78] sm:$0xff]
        %v813 = vlaneseq
        %v814 = vand.u32 %v813, 127
        %v815 = vlaneseq
        %v816 = vshrl.u32 %v815, 7
        %v817 = vsub.s32 %v814, %v816
        %v818 = vrot.slane %v701, %v817
        %v819 = vadd.s32 %v814, 4294967288
        %v820 = vlaneseq
        %v821 = vshrl.u32 %v820, 7
        %v822 = vsub.s32 %v819, %v821
        %v823 = vrot.slane %v702, %v822
        %vm824 = vcmask 130112
        %v825 = vsel %vm824, %v823, %v818
        %v826 = vadd.s32 %v814, 4294967280
        %v827 = vlaneseq
        %v828 = vshrl.u32 %v827, 7
        %v829 = vsub.s32 %v826, %v828
        %v830 = vrot.slane %v703, %v829
        %vm831 = vcmask 195712
        %v832 = vsel %vm831, %v830, %v825
        %v833 = vadd.s32 %v814, 4294967272
        %v834 = vlaneseq
        %v835 = vshrl.u32 %v834, 7
        %v836 = vsub.s32 %v833, %v835
        %v837 = vrot.slane %v704, %v836
        %vm838 = vcmask 261312
        %v839 = vsel %vm838, %v837, %v832
        %v840 = vadd.s32 %v814, 4294967264
        %v841 = vlaneseq
        %v842 = vshrl.u32 %v841, 7
        %v843 = vsub.s32 %v840, %v842
        %v844 = vrot.slane %v705, %v843
        %vm845 = vcmask 326912
        %v846 = vsel %vm845, %v844, %v839
        %v847 = vadd.s32 %v814, 4294967256
        %v848 = vlaneseq
        %v849 = vshrl.u32 %v848, 7
        %v850 = vsub.s32 %v847, %v849
        %v851 = vrot.slane %v706, %v850
        %vm852 = vcmask 392512
        %v853 = vsel %vm852, %v851, %v846
        %v854 = vadd.s32 %v814, 4294967248
        %v855 = vlaneseq
        %v856 = vshrl.u32 %v855, 7
        %v857 = vsub.s32 %v854, %v856
        %v858 = vrot.slane %v707, %v857
        %vm859 = vcmask 458112
        %v860 = vsel %vm859, %v858, %v853
        %v861 = vadd.s32 %v814, 4294967240
        %v862 = vlaneseq
        %v863 = vshrl.u32 %v862, 7
        %v864 = vsub.s32 %v861, %v863
        %v865 = vrot.slane %v708, %v864
        %vm866 = vcmask 523712
        %v867 = vsel %vm866, %v865, %v860
        %v868 = vadd.s32 %v814, 4294967232
        %v869 = vlaneseq
        %v870 = vshrl.u32 %v869, 7
        %v871 = vsub.s32 %v868, %v870
        %v872 = vrot.slane %v709, %v871
        %vm873 = vcmask 589312
        %v874 = vsel %vm873, %v872, %v867
        %v875 = vadd.s32 %v814, 4294967224
        %v876 = vlaneseq
        %v877 = vshrl.u32 %v876, 7
        %v878 = vsub.s32 %v875, %v877
        %v879 = vrot.slane %v710, %v878
        %vm880 = vcmask 654912
        %v881 = vsel %vm880, %v879, %v874
        %v882 = vadd.s32 %v814, 4294967216
        %v883 = vlaneseq
        %v884 = vshrl.u32 %v883, 7
        %v885 = vsub.s32 %v882, %v884
        %v886 = vrot.slane %v711, %v885
        %vm887 = vcmask 720512
        %v888 = vsel %vm887, %v886, %v881
        %v889 = vadd.s32 %v814, 4294967208
        %v890 = vlaneseq
        %v891 = vshrl.u32 %v890, 7
        %v892 = vsub.s32 %v889, %v891
        %v893 = vrot.slane %v712, %v892
        %vm894 = vcmask 786112
        %v895 = vsel %vm894, %v893, %v888
        %v896 = vadd.s32 %v814, 4294967200
        %v897 = vlaneseq
        %v898 = vshrl.u32 %v897, 7
        %v899 = vsub.s32 %v896, %v898
        %v900 = vrot.slane %v713, %v899
        %vm901 = vcmask 851712
        %v902 = vsel %vm901, %v900, %v895
        %v903 = vadd.s32 %v814, 4294967192
        %v904 = vlaneseq
        %v905 = vshrl.u32 %v904, 7
        %v906 = vsub.s32 %v903, %v905
        %v907 = vrot.slane %v714, %v906
        %vm908 = vcmask 917312
        %v909 = vsel %vm908, %v907, %v902
        %v910 = vadd.s32 %v814, 4294967184
        %v911 = vlaneseq
        %v912 = vshrl.u32 %v911, 7
        %v913 = vsub.s32 %v910, %v912
        %v914 = vrot.slane %v715, %v913
        %vm915 = vcmask 982912
        %v916 = vsel %vm915, %v914, %v909
        %v917 = vadd.s32 %v814, 4294967176
        %v918 = vlaneseq
        %v919 = vshrl.u32 %v918, 7
        %v920 = vsub.s32 %v917, %v919
        %v921 = vrot.slane %v716, %v920
        %vm922 = vcmask 1048512
        %v923 = vsel %vm922, %v921, %v916
        %v924 = vlaneseq
        %v925 = vshrl.u32 %v924, 7
        %v926 = vsub.s32 %v814, %v925
        %v927 = vrot.slane %v717, %v926
        %v928 = vlaneseq
        %v929 = vshrl.u32 %v928, 7
        %v930 = vsub.s32 %v819, %v929
        %v931 = vrot.slane %v718, %v930
        %v932 = vsel %vm824, %v931, %v927
        %v933 = vlaneseq
        %v934 = vshrl.u32 %v933, 7
        %v935 = vsub.s32 %v826, %v934
        %v936 = vrot.slane %v719, %v935
        %v937 = vsel %vm831, %v936, %v932
        %v938 = vlaneseq
        %v939 = vshrl.u32 %v938, 7
        %v940 = vsub.s32 %v833, %v939
        %v941 = vrot.slane %v720, %v940
        %v942 = vsel %vm838, %v941, %v937
        %v943 = vlaneseq
        %v944 = vshrl.u32 %v943, 7
        %v945 = vsub.s32 %v840, %v944
        %v946 = vrot.slane %v721, %v945
        %v947 = vsel %vm845, %v946, %v942
        %v948 = vlaneseq
        %v949 = vshrl.u32 %v948, 7
        %v950 = vsub.s32 %v847, %v949
        %v951 = vrot.slane %v722, %v950
        %v952 = vsel %vm852, %v951, %v947
        %v953 = vlaneseq
        %v954 = vshrl.u32 %v953, 7
        %v955 = vsub.s32 %v854, %v954
        %v956 = vrot.slane %v723, %v955
        %v957 = vsel %vm859, %v956, %v952
        %v958 = vlaneseq
        %v959 = vshrl.u32 %v958, 7
        %v960 = vsub.s32 %v861, %v959
        %v961 = vrot.slane %v724, %v960
        %v962 = vsel %vm866, %v961, %v957
        %v963 = vlaneseq
        %v964 = vshrl.u32 %v963, 7
        %v965 = vsub.s32 %v868, %v964
        %v966 = vrot.slane %v725, %v965
        %v967 = vsel %vm873, %v966, %v962
        %v968 = vlaneseq
        %v969 = vshrl.u32 %v968, 7
        %v970 = vsub.s32 %v875, %v969
        %v971 = vrot.slane %v726, %v970
        %v972 = vsel %vm880, %v971, %v967
        %v973 = vlaneseq
        %v974 = vshrl.u32 %v973, 7
        %v975 = vsub.s32 %v882, %v974
        %v976 = vrot.slane %v727, %v975
        %v977 = vsel %vm887, %v976, %v972
        %v978 = vlaneseq
        %v979 = vshrl.u32 %v978, 7
        %v980 = vsub.s32 %v889, %v979
        %v981 = vrot.slane %v728, %v980
        %v982 = vsel %vm894, %v981, %v977
        %v983 = vlaneseq
        %v984 = vshrl.u32 %v983, 7
        %v985 = vsub.s32 %v896, %v984
        %v986 = vrot.slane %v729, %v985
        %v987 = vsel %vm901, %v986, %v982
        %v988 = vlaneseq
        %v989 = vshrl.u32 %v988, 7
        %v990 = vsub.s32 %v903, %v989
        %v991 = vrot.slane %v730, %v990
        %v992 = vsel %vm908, %v991, %v987
        %v993 = vlaneseq
        %v994 = vshrl.u32 %v993, 7
        %v995 = vsub.s32 %v910, %v994
        %v996 = vrot.slane %v731, %v995
        %v997 = vsel %vm915, %v996, %v992
        %v998 = vlaneseq
        %v999 = vshrl.u32 %v998, 7
        %v1000 = vsub.s32 %v917, %v999
        %v1001 = vrot.slane %v732, %v1000
        %v1002 = vsel %vm922, %v1001, %v997
        %v1003 = vlaneseq
        %v1004 = vshrl.u32 %v1003, 7
        %v1005 = vsub.s32 %v814, %v1004
        %v1006 = vrot.slane %v733, %v1005
        %v1007 = vlaneseq
        %v1008 = vshrl.u32 %v1007, 7
        %v1009 = vsub.s32 %v819, %v1008
        %v1010 = vrot.slane %v734, %v1009
        %v1011 = vsel %vm824, %v1010, %v1006
        %v1012 = vlaneseq
        %v1013 = vshrl.u32 %v1012, 7
        %v1014 = vsub.s32 %v826, %v1013
        %v1015 = vrot.slane %v735, %v1014
        %v1016 = vsel %vm831, %v1015, %v1011
        %v1017 = vlaneseq
        %v1018 = vshrl.u32 %v1017, 7
        %v1019 = vsub.s32 %v833, %v1018
        %v1020 = vrot.slane %v736, %v1019
        %v1021 = vsel %vm838, %v1020, %v1016
        %v1022 = vlaneseq
        %v1023 = vshrl.u32 %v1022, 7
        %v1024 = vsub.s32 %v840, %v1023
        %v1025 = vrot.slane %v737, %v1024
        %v1026 = vsel %vm845, %v1025, %v1021
        %v1027 = vlaneseq
        %v1028 = vshrl.u32 %v1027, 7
        %v1029 = vsub.s32 %v847, %v1028
        %v1030 = vrot.slane %v738, %v1029
        %v1031 = vsel %vm852, %v1030, %v1026
        %v1032 = vlaneseq
        %v1033 = vshrl.u32 %v1032, 7
        %v1034 = vsub.s32 %v854, %v1033
        %v1035 = vrot.slane %v739, %v1034
        %v1036 = vsel %vm859, %v1035, %v1031
        %v1037 = vlaneseq
        %v1038 = vshrl.u32 %v1037, 7
        %v1039 = vsub.s32 %v861, %v1038
        %v1040 = vrot.slane %v740, %v1039
        %v1041 = vsel %vm866, %v1040, %v1036
        %v1042 = vlaneseq
        %v1043 = vshrl.u32 %v1042, 7
        %v1044 = vsub.s32 %v868, %v1043
        %v1045 = vrot.slane %v741, %v1044
        %v1046 = vsel %vm873, %v1045, %v1041
        %v1047 = vlaneseq
        %v1048 = vshrl.u32 %v1047, 7
        %v1049 = vsub.s32 %v875, %v1048
        %v1050 = vrot.slane %v742, %v1049
        %v1051 = vsel %vm880, %v1050, %v1046
        %v1052 = vlaneseq
        %v1053 = vshrl.u32 %v1052, 7
        %v1054 = vsub.s32 %v882, %v1053
        %v1055 = vrot.slane %v743, %v1054
        %v1056 = vsel %vm887, %v1055, %v1051
        %v1057 = vlaneseq
        %v1058 = vshrl.u32 %v1057, 7
        %v1059 = vsub.s32 %v889, %v1058
        %v1060 = vrot.slane %v744, %v1059
        %v1061 = vsel %vm894, %v1060, %v1056
        %v1062 = vlaneseq
        %v1063 = vshrl.u32 %v1062, 7
        %v1064 = vsub.s32 %v896, %v1063
        %v1065 = vrot.slane %v745, %v1064
        %v1066 = vsel %vm901, %v1065, %v1061
        %v1067 = vlaneseq
        %v1068 = vshrl.u32 %v1067, 7
        %v1069 = vsub.s32 %v903, %v1068
        %v1070 = vrot.slane %v746, %v1069
        %v1071 = vsel %vm908, %v1070, %v1066
        %v1072 = vlaneseq
        %v1073 = vshrl.u32 %v1072, 7
        %v1074 = vsub.s32 %v910, %v1073
        %v1075 = vrot.slane %v747, %v1074
        %v1076 = vsel %vm915, %v1075, %v1071
        %v1077 = vlaneseq
        %v1078 = vshrl.u32 %v1077, 7
        %v1079 = vsub.s32 %v917, %v1078
        %v1080 = vrot.slane %v748, %v1079
        %v1081 = vsel %vm922, %v1080, %v1076
        %vm1082 = vcmask 1041409
        %v1083 = vsel %vm1082, %v1002, %v923
        %vm1084 = vcmask 1042434
        %v1085 = vsel %vm1084, %v1081, %v1083
        %1087 = vmatprep.subr.mxu0 0.0
        %1088 = vmatpush1.msra.mxu0 %v764
        %1089 = vmatprep.subr.mxu0 0.0
        %1090 = vmatpush1.msra.mxu0 %v763
        %1091 = vmatprep.subr.mxu0 0.0
        %1092 = vmatpush1.msra.mxu0 %v762
        %1093 = vmatprep.subr.mxu0 0.0
        %1094 = vmatpush1.msra.mxu0 %v761
        %1095 = vmatprep.subr.mxu0 0.0
        %1096 = vmatpush1.msra.mxu0 %v760
        %1097 = vmatprep.subr.mxu0 0.0
        %1098 = vmatpush1.msra.mxu0 %v759
        %1099 = vmatprep.subr.mxu0 0.0
        %1100 = vmatpush1.msra.mxu0 %v758
        %1101 = vmatprep.subr.mxu0 0.0
        %1102 = vmatpush1.msra.mxu0 %v757
        %1103 = vmatprep.subr.mxu0 0.0
        %1104 = vmatpush1.msra.mxu0 %v756
        %1105 = vmatprep.subr.mxu0 0.0
        %1106 = vmatpush1.msra.mxu0 %v755
        %1107 = vmatprep.subr.mxu0 0.0
        %1108 = vmatpush1.msra.mxu0 %v754
        %1109 = vmatprep.subr.mxu0 0.0
        %1110 = vmatpush1.msra.mxu0 %v753
        %1111 = vmatprep.subr.mxu0 0.0
        %1112 = vmatpush1.msra.mxu0 %v752
        %1113 = vmatprep.subr.mxu0 0.0
        %1114 = vmatpush1.msra.mxu0 %v751
        %1115 = vmatprep.subr.mxu0 0.0
        %1116 = vmatpush1.msra.mxu0 %v750
        %1117 = vmatprep.subr.mxu0 0.0
        %1118 = vmatpush1.msra.mxu0 %v749
        %1119 = vmatprep.subr.mxu0 0.0
        %1120 = vmatpush2.msra.mxu0 0.0
        %1121 = vmatprep.subr.mxu0 0.0
        %1122 = vmatpush2.msra.mxu0 0.0
        %1123 = vmatprep.subr.mxu0 0.0
        %1124 = vmatpush2.msra.mxu0 0.0
        %1125 = vmatprep.subr.mxu0 0.0
        %1126 = vmatpush2.msra.mxu0 0.0
        %1127 = vmatprep.subr.mxu0 0.0
        %1128 = vmatpush2.msra.mxu0 0.0
        %1129 = vmatprep.subr.mxu0 0.0
        %1130 = vmatpush2.msra.mxu0 0.0
        %1131 = vmatprep.subr.mxu0 0.0
        %1132 = vmatpush2.msra.mxu0 0.0
        %1133 = vmatprep.subr.mxu0 0.0
        %1134 = vmatpush2.msra.mxu0 0.0
        %1135 = vmatprep.subr.mxu0 0.0
        %1136 = vmatpush2.msra.mxu0 0.0
        %1137 = vmatprep.subr.mxu0 0.0
        %1138 = vmatpush2.msra.mxu0 0.0
        %1139 = vmatprep.subr.mxu0 0.0
        %1140 = vmatpush2.msra.mxu0 0.0
        %1141 = vmatprep.subr.mxu0 0.0
        %1142 = vmatpush2.msra.mxu0 0.0
        %1143 = vmatprep.subr.mxu0 0.0
        %1144 = vmatpush2.msra.mxu0 0.0
        %1145 = vmatprep.subr.mxu0 0.0
        %1146 = vmatpush2.msra.mxu0 0.0
        %1147 = vmatprep.subr.mxu0 0.0
        %1148 = vmatpush2.msra.mxu0 0.0
        %1149 = vmatprep.subr.mxu0 0.0
        %1150 = vmatpush2.msra.mxu0 0.0
        %1151 = vmatprep.mubr.f32.mxu0 0.0
        %1152 = vmatmul.mubr.f32.gmra.mxu0 %v1085
        %v1153 = vpop.f32.mrf.mxu0
        %v1154 = vadd.f32 0.0, %v1153
        %v1155 = vpop.f32.mrf.mxu0
        %1156 = vdwg.mxu0
        %v1157 = vmax.f32 %v1154, 0.0
        %v1158 = vld [vmem:[%s4] sm:$0xff]
        %vm1159 = vcmask 64512
        %v1161 = vsel %vm1159, %v1157, 0
        %1163 = vmatprep.subr.mxu0 0.0
        %1164 = vmatpush1.msra.mxu0 0.0
        %1165 = vmatprep.subr.mxu0 0.0
        %1166 = vmatpush1.msra.mxu0 0.0
        %1167 = vmatprep.subr.mxu0 0.0
        %1168 = vmatpush1.msra.mxu0 0.0
        %1169 = vmatprep.subr.mxu0 0.0
        %1170 = vmatpush1.msra.mxu0 0.0
        %1171 = vmatprep.subr.mxu0 0.0
        %1172 = vmatpush1.msra.mxu0 0.0
        %1173 = vmatprep.subr.mxu0 0.0
        %1174 = vmatpush1.msra.mxu0 0.0
        %1175 = vmatprep.subr.mxu0 0.0
        %1176 = vmatpush1.msra.mxu0 0.0
        %1177 = vmatprep.subr.mxu0 0.0
        %1178 = vmatpush1.msra.mxu0 0.0
        %1179 = vmatprep.subr.mxu0 0.0
        %1180 = vmatpush1.msra.mxu0 0.0
        %1181 = vmatprep.subr.mxu0 0.0
        %1182 = vmatpush1.msra.mxu0 0.0
        %1183 = vmatprep.subr.mxu0 0.0
        %1184 = vmatpush1.msra.mxu0 0.0
        %1185 = vmatprep.subr.mxu0 0.0
        %1186 = vmatpush1.msra.mxu0 0.0
        %1187 = vmatprep.subr.mxu0 0.0
        %1188 = vmatpush1.msra.mxu0 0.0
        %1189 = vmatprep.subr.mxu0 0.0
        %1190 = vmatpush1.msra.mxu0 0.0
        %1191 = vmatprep.subr.mxu0 0.0
        %1192 = vmatpush1.msra.mxu0 0.0
        %1193 = vmatprep.subr.mxu0 0.0
        %1194 = vmatpush1.msra.mxu0 %v1158
        %1195 = vmatprep.subr.mxu0 0.0
        %1196 = vmatpush2.msra.mxu0 0.0
        %1197 = vmatprep.subr.mxu0 0.0
        %1198 = vmatpush2.msra.mxu0 0.0
        %1199 = vmatprep.subr.mxu0 0.0
        %1200 = vmatpush2.msra.mxu0 0.0
        %1201 = vmatprep.subr.mxu0 0.0
        %1202 = vmatpush2.msra.mxu0 0.0
        %1203 = vmatprep.subr.mxu0 0.0
        %1204 = vmatpush2.msra.mxu0 0.0
        %1205 = vmatprep.subr.mxu0 0.0
        %1206 = vmatpush2.msra.mxu0 0.0
        %1207 = vmatprep.subr.mxu0 0.0
        %1208 = vmatpush2.msra.mxu0 0.0
        %1209 = vmatprep.subr.mxu0 0.0
        %1210 = vmatpush2.msra.mxu0 0.0
        %1211 = vmatprep.subr.mxu0 0.0
        %1212 = vmatpush2.msra.mxu0 0.0
        %1213 = vmatprep.subr.mxu0 0.0
        %1214 = vmatpush2.msra.mxu0 0.0
        %1215 = vmatprep.subr.mxu0 0.0
        %1216 = vmatpush2.msra.mxu0 0.0
        %1217 = vmatprep.subr.mxu0 0.0
        %1218 = vmatpush2.msra.mxu0 0.0
        %1219 = vmatprep.subr.mxu0 0.0
        %1220 = vmatpush2.msra.mxu0 0.0
        %1221 = vmatprep.subr.mxu0 0.0
        %1222 = vmatpush2.msra.mxu0 0.0
        %1223 = vmatprep.subr.mxu0 0.0
        %1224 = vmatpush2.msra.mxu0 0.0
        %1225 = vmatprep.subr.mxu0 0.0
        %1226 = vmatpush2.msra.mxu0 0.0
        %1227 = vmatprep.mubr.f32.mxu0 0.0
        %1228 = vmatmul.mubr.f32.gmra.mxu0 %v1161
        %v1229 = vpop.f32.mrf.mxu0
        %v1230 = vadd.f32 0.0, %v1229
        %v1231 = vpop.f32.mrf.mxu0
        %1232 = vdwg.mxu0
        %v1233 = vxor.u32 %v1230, 2147483648
        %v1234 = vmul.f32 %v1233, 1.442695
        %v1235 = vpow.pop %v1234
        %v1236 = vadd.f32 %v1235, 1.0
        %v1237 = vrcp.pop %v1236
        %v1238 = vmul.f32 1.0, %v1237
        %1239 = vst [vmem:[%s307] sm:$0x1] %v1238
        %1240 = vst [vmem:[%s307 - $0x1] sm:$0x4] %v1238
        %v1241 = vadd.f32 %v717, 1.0
        %v1242 = vadd.f32 %v718, 1.0
        %v1243 = vadd.f32 %v719, 1.0
        %v1244 = vadd.f32 %v720, 1.0
        %v1245 = vadd.f32 %v721, 1.0
        %v1246 = vadd.f32 %v722, 1.0
        %v1247 = vadd.f32 %v723, 1.0
        %v1248 = vadd.f32 %v724, 1.0
        %v1249 = vadd.f32 %v725, 1.0
        %v1250 = vadd.f32 %v726, 1.0
        %v1251 = vadd.f32 %v727, 1.0
        %v1252 = vadd.f32 %v728, 1.0
        %v1253 = vadd.f32 %v729, 1.0
        %v1254 = vadd.f32 %v730, 1.0
        %v1255 = vadd.f32 %v731, 1.0
        %v1256 = vadd.f32 %v732, 1.0
        %v1273 = vlaneseq
        %v1274 = vshrl.u32 %v1273, 7
        %v1275 = vsub.s32 %v814, %v1274
        %v1276 = vrot.slane %v1241, %v1275
        %v1277 = vlaneseq
        %v1278 = vshrl.u32 %v1277, 7
        %v1279 = vsub.s32 %v819, %v1278
        %v1280 = vrot.slane %v1242, %v1279
        %v1281 = vsel %vm824, %v1280, %v1276
        %v1282 = vlaneseq
        %v1283 = vshrl.u32 %v1282, 7
        %v1284 = vsub.s32 %v826, %v1283
        %v1285 = vrot.slane %v1243, %v1284
        %v1286 = vsel %vm831, %v1285, %v1281
        %v1287 = vlaneseq
        %v1288 = vshrl.u32 %v1287, 7
        %v1289 = vsub.s32 %v833, %v1288
        %v1290 = vrot.slane %v1244, %v1289
        %v1291 = vsel %vm838, %v1290, %v1286
        %v1292 = vlaneseq
        %v1293 = vshrl.u32 %v1292, 7
        %v1294 = vsub.s32 %v840, %v1293
        %v1295 = vrot.slane %v1245, %v1294
        %v1296 = vsel %vm845, %v1295, %v1291
        %v1297 = vlaneseq
        %v1298 = vshrl.u32 %v1297, 7
        %v1299 = vsub.s32 %v847, %v1298
        %v1300 = vrot.slane %v1246, %v1299
        %v1301 = vsel %vm852, %v1300, %v1296
        %v1302 = vlaneseq
        %v1303 = vshrl.u32 %v1302, 7
        %v1304 = vsub.s32 %v854, %v1303
        %v1305 = vrot.slane %v1247, %v1304
        %v1306 = vsel %vm859, %v1305, %v1301
        %v1307 = vlaneseq
        %v1308 = vshrl.u32 %v1307, 7
        %v1309 = vsub.s32 %v861, %v1308
        %v1310 = vrot.slane %v1248, %v1309
        %v1311 = vsel %vm866, %v1310, %v1306
        %v1312 = vlaneseq
        %v1313 = vshrl.u32 %v1312, 7
        %v1314 = vsub.s32 %v868, %v1313
        %v1315 = vrot.slane %v1249, %v1314
        %v1316 = vsel %vm873, %v1315, %v1311
        %v1317 = vlaneseq
        %v1318 = vshrl.u32 %v1317, 7
        %v1319 = vsub.s32 %v875, %v1318
        %v1320 = vrot.slane %v1250, %v1319
        %v1321 = vsel %vm880, %v1320, %v1316
        %v1322 = vlaneseq
        %v1323 = vshrl.u32 %v1322, 7
        %v1324 = vsub.s32 %v882, %v1323
        %v1325 = vrot.slane %v1251, %v1324
        %v1326 = vsel %vm887, %v1325, %v1321
        %v1327 = vlaneseq
        %v1328 = vshrl.u32 %v1327, 7
        %v1329 = vsub.s32 %v889, %v1328
        %v1330 = vrot.slane %v1252, %v1329
        %v1331 = vsel %vm894, %v1330, %v1326
        %v1332 = vlaneseq
        %v1333 = vshrl.u32 %v1332, 7
        %v1334 = vsub.s32 %v896, %v1333
        %v1335 = vrot.slane %v1253, %v1334
        %v1336 = vsel %vm901, %v1335, %v1331
        %v1337 = vlaneseq
        %v1338 = vshrl.u32 %v1337, 7
        %v1339 = vsub.s32 %v903, %v1338
        %v1340 = vrot.slane %v1254, %v1339
        %v1341 = vsel %vm908, %v1340, %v1336
        %v1342 = vlaneseq
        %v1343 = vshrl.u32 %v1342, 7
        %v1344 = vsub.s32 %v910, %v1343
        %v1345 = vrot.slane %v1255, %v1344
        %v1346 = vsel %vm915, %v1345, %v1341
        %v1347 = vlaneseq
        %v1348 = vshrl.u32 %v1347, 7
        %v1349 = vsub.s32 %v917, %v1348
        %v1350 = vrot.slane %v1256, %v1349
        %v1351 = vsel %vm922, %v1350, %v1346
        %v1353 = vmul.f32 %v1238, %v1351
        %1354 = vst [vmem:[%s307 + $0x1] sm:$0x2] %v1353
      $region48: #{senet_shared_forward.2} parent=39 // pred_fallthru
        _
      %p1355 = scmp.lt.s32.totalorder %s20, 1
      %s1356 = scalar_select %p1355, %s20, 1
      %s1357 = smul.addr %s1356, 4
      %s1358 = scalar_lea.vmem %s5, %s1357
      // Predicated region
      $region49: #{senet_shared_forward.2} parent=39 // pred_check
        %p1359 = pneg %p172
      $region50: #{senet_shared_forward.2} parent=39 // pred_check_branch
        %1361 = sbr.rel (%p1359) target = $region52
      $region51: #{senet_shared_forward.2} parent=39 // pred_region
        _
      $region52: #{senet_shared_forward.2} parent=39 // pred_fallthru
        _
    $region40: #{senet_shared_forward.2} parent=5 // pred_fallthru
      _
    %p1362 = scmp.le.s32.totalorder 2, %s11
    // Predicated region
    $region53: #{senet_shared_forward.2} parent=5 // pred_check
      %p1363 = pneg %p1362
    $region54: #{senet_shared_forward.2} parent=5 // pred_check_branch
      %1365 = sbr.rel (%p1363) target = $region56
    $region55: #{senet_shared_forward.2} parent=5 // pred_region
      %s1366 = ssub.s32 %s11, 2
      // Predicated region
      $region57: #{senet_shared_forward.2} parent=55 // pred_check
        %p1367 = pneg %p178
      $region58: #{senet_shared_forward.2} parent=55 // pred_check_branch
        %1369 = sbr.rel (%p1367) target = $region60
      $region59: #{senet_shared_forward.2} parent=55 // pred_region
        %p1370 = scmp.lt.s32.totalorder %s22, 1
        %s1371 = scalar_select %p1370, %s22, 1
        %s1372 = smul.addr %s1371, 4
        %s1373 = scalar_lea.vmem %s5, %s1372
      $region60: #{senet_shared_forward.2} parent=55 // pred_fallthru
        _
    $region56: #{senet_shared_forward.2} parent=5 // pred_fallthru
      _
  $region6: #{senet_shared_forward.2} parent=0 // loop_footer
    %s15 = sadd.s32 1, %s11
  $region7: #{senet_shared_forward.2} parent=0 // loop_footer_branch
    %10 = sbr.rel target = $region3
  $region8: #{senet_shared_forward.2} parent=0 // loop_exit
    _

// kernel: senet_shared_forward.3
$region0: #{senet_shared_forward.3}
  #allocation0 [shape = 'u32[]', space=smem, size = 0x4, offset = 0x4, fixed_abs, tag = 'smem constant byte address 0x4 - core index']
  #allocation1 [shape = 'u32[144,128]{1,0:T(1,128)}', space=vmem, size = 0x12000, scoped, tag = 'internal scratch']
  %s0 = inlined_call_operand.vmem [shape: f32[2,128,128], index: 0, kind: input, shape index: {}]
  %s1 = inlined_call_operand.vmem [shape: f32[2,128,128], index: 1, kind: input, shape index: {}]
  %s2 = inlined_call_operand.vmem [shape: f32[2,128,128], index: 2, kind: input, shape index: {}]
  %s3 = inlined_call_operand.vmem [shape: f32[2,128,1], index: 3, kind: input, shape index: {}]
  %s4 = inlined_call_operand.vmem [shape: f32[2,128,1], index: 4, kind: input, shape index: {}]
  %s5 = inlined_call_operand.vmem [shape: f32[8,128], index: 5, kind: input, shape index: {}]
  %s6 = inlined_call_operand.vmem [shape: f32[128,8], index: 6, kind: input, shape index: {}]
  %s7 = inlined_call_operand.vmem [shape: f32[2,128,128], index: 7, kind: output, shape index: {0}]
  %s8 = inlined_call_operand.vmem [shape: f32[2,128,128], index: 8, kind: output, shape index: {1}]
  %s9 = inlined_call_operand.vmem [shape: f32[2,128,128], index: 9, kind: output, shape index: {2}]
  %10 = xla_tuple %s7, %s8, %s9
  %s11 = sld [smem:[#allocation0]]
  $region77: #{senet_shared_forward.3} parent=0
    _
  %s13 = ssub.s32 1, %s11
  %s14 = scalar_select 0, %s13, %s11
  loop: start=0, step=1, limit=4
  $region2: #{senet_shared_forward.3} parent=0 // loop_pre_header
    _
  $region3: #{senet_shared_forward.3} parent=0 // loop_header
    %s16 = sphi 0, %s20
    %p17 = scmp.ge.s32.totalorder %s16, 4
    %s23 = sphi 0, %s35
    %s24 = sphi 0, %s31
    %s25 = sphi 0, %s23
    %s26 = sphi 0, %s24
    %s27 = sphi 0, %s25
    %s28 = sphi 0, %s26
    %s40 = sphi 0, %s42
    %s43 = sphi 0, %s40
    %s44 = sphi 0, %s43
    %s60 = sphi 0, %s44
    %s68 = sphi 0, %s70
    %s71 = sphi 0, %s68
    %s72 = sphi 0, %s71
    %s88 = sphi 0, %s72
    %s96 = sphi 0, %s98
    %s99 = sphi 0, %s96
    %s100 = sphi 0, %s99
    %s116 = sphi 0, %s100
    %s122 = sphi 0, %s124
    %s125 = sphi 0, %s122
    %s126 = sphi 0, %s125
    %s142 = sphi 0, %s126
    %s148 = sphi 0, %s150
    %s151 = sphi 0, %s148
    %s152 = sphi 0, %s151
    %s168 = sphi 0, %s152
    %s172 = sphi 0, %s172
    %s174 = sphi 0, %s172
    %s175 = sphi 0, %s174
    %s189 = sphi 0, %s175
    %s193 = sphi 0, %s193
    %s195 = sphi 0, %s193
    %s196 = sphi 0, %s195
    %s210 = sphi 0, %s196
    %s218 = sphi 0, %s220
    %s221 = sphi 0, %s218
    %s222 = sphi 0, %s221
    %s238 = sphi 0, %s222
    %s246 = sphi 0, %s248
    %s249 = sphi 0, %s246
    %s250 = sphi 0, %s249
    %s266 = sphi 0, %s250
    %s274 = sphi 0, %s276
    %s277 = sphi 0, %s274
    %s278 = sphi 0, %s277
    %s294 = sphi 0, %s278
  $region4: #{senet_shared_forward.3} parent=0 // loop_header_branch
    %19 = sbr.rel (%p17) target = $region8
  $region5: #{senet_shared_forward.3} parent=0 // loop_body
    %s21 = ssub.s32 %s16, 1
    %s22 = ssub.s32 %s16, 2
    %s29 = sadd.s32 1, %s24
    %p30 = scmp.ge.s32.totalorder %s29, 1
    %s31 = scalar_select %p30, 0, %s29
    %s32 = sadd.s32 1, %s23
    %s33 = scalar_select %p30, %s32, %s23
    %p34 = scmp.ge.s32.totalorder %s33, 2
    %s35 = scalar_select %p34, 0, %s33
    %s36 = ssub.s32 %s23, %s35
    %s37 = ssub.s32 %s24, %s31
    %s38 = sor.u32 %s36, %s37
    %p39 = scmp.eq.s32.totalorder %s38, 0
    %s41 = sadd.s32 %s40, 1
    %s42 = scalar_select %p39, %s40, %s41
    %p45 = pneg %p39
    %p46 = scmp.eq.s32.totalorder %s16, 1
    %p47 = por %p45, %p46
    %p48 = scmp.ne.s32.totalorder %s40, %s43
    %p49 = scmp.eq.s32.totalorder %s16, 0
    %p50 = por %p48, %p49
    %p51 = scmp.ne.s32.totalorder %s40, %s43
    %p52 = scmp.eq.s32.totalorder %s21, 1
    %p53 = por %p51, %p52
    %p54 = scmp.ne.s32.totalorder %s43, %s44
    %p55 = scmp.eq.s32.totalorder %s21, 0
    %p56 = por %p54, %p55
    %p57 = scmp.ne.s32.totalorder %s43, %s44
    %p58 = scmp.eq.s32.totalorder %s22, 1
    %p59 = por %p57, %p58
    %p61 = scmp.ne.s32.totalorder %s44, %s60
    %p62 = scmp.eq.s32.totalorder %s22, 0
    %p63 = por %p61, %p62
    %s64 = ssub.s32 %s23, %s35
    %s65 = ssub.s32 %s24, %s31
    %s66 = sor.u32 %s64, %s65
    %p67 = scmp.eq.s32.totalorder %s66, 0
    %s69 = sadd.s32 %s68, 1
    %s70 = scalar_select %p67, %s68, %s69
    %p73 = pneg %p67
    %p74 = scmp.eq.s32.totalorder %s16, 1
    %p75 = por %p73, %p74
    %p76 = scmp.ne.s32.totalorder %s68, %s71
    %p77 = scmp.eq.s32.totalorder %s16, 0
    %p78 = por %p76, %p77
    %p79 = scmp.ne.s32.totalorder %s68, %s71
    %p80 = scmp.eq.s32.totalorder %s21, 1
    %p81 = por %p79, %p80
    %p82 = scmp.ne.s32.totalorder %s71, %s72
    %p83 = scmp.eq.s32.totalorder %s21, 0
    %p84 = por %p82, %p83
    %p85 = scmp.ne.s32.totalorder %s71, %s72
    %p86 = scmp.eq.s32.totalorder %s22, 1
    %p87 = por %p85, %p86
    %p89 = scmp.ne.s32.totalorder %s72, %s88
    %p90 = scmp.eq.s32.totalorder %s22, 0
    %p91 = por %p89, %p90
    %s92 = ssub.s32 %s23, %s35
    %s93 = ssub.s32 %s24, %s31
    %s94 = sor.u32 %s92, %s93
    %p95 = scmp.eq.s32.totalorder %s94, 0
    %s97 = sadd.s32 %s96, 1
    %s98 = scalar_select %p95, %s96, %s97
    %p101 = pneg %p95
    %p102 = scmp.eq.s32.totalorder %s16, 1
    %p103 = por %p101, %p102
    %p104 = scmp.ne.s32.totalorder %s96, %s99
    %p105 = scmp.eq.s32.totalorder %s16, 0
    %p106 = por %p104, %p105
    %p107 = scmp.ne.s32.totalorder %s96, %s99
    %p108 = scmp.eq.s32.totalorder %s21, 1
    %p109 = por %p107, %p108
    %p110 = scmp.ne.s32.totalorder %s99, %s100
    %p111 = scmp.eq.s32.totalorder %s21, 0
    %p112 = por %p110, %p111
    %p113 = scmp.ne.s32.totalorder %s99, %s100
    %p114 = scmp.eq.s32.totalorder %s22, 1
    %p115 = por %p113, %p114
    %p117 = scmp.ne.s32.totalorder %s100, %s116
    %p118 = scmp.eq.s32.totalorder %s22, 0
    %p119 = por %p117, %p118
    %s120 = ssub.s32 %s23, %s35
    %p121 = scmp.eq.s32.totalorder %s120, 0
    %s123 = sadd.s32 %s122, 1
    %s124 = scalar_select %p121, %s122, %s123
    %p127 = pneg %p121
    %p128 = scmp.eq.s32.totalorder %s16, 1
    %p129 = por %p127, %p128
    %p130 = scmp.ne.s32.totalorder %s122, %s125
    %p131 = scmp.eq.s32.totalorder %s16, 0
    %p132 = por %p130, %p131
    %p133 = scmp.ne.s32.totalorder %s122, %s125
    %p134 = scmp.eq.s32.totalorder %s21, 1
    %p135 = por %p133, %p134
    %p136 = scmp.ne.s32.totalorder %s125, %s126
    %p137 = scmp.eq.s32.totalorder %s21, 0
    %p138 = por %p136, %p137
    %p139 = scmp.ne.s32.totalorder %s125, %s126
    %p140 = scmp.eq.s32.totalorder %s22, 1
    %p141 = por %p139, %p140
    %p143 = scmp.ne.s32.totalorder %s126, %s142
    %p144 = scmp.eq.s32.totalorder %s22, 0
    %p145 = por %p143, %p144
    %s146 = ssub.s32 %s23, %s35
    %p147 = scmp.eq.s32.totalorder %s146, 0
    %s149 = sadd.s32 %s148, 1
    %s150 = scalar_select %p147, %s148, %s149
    %p153 = pneg %p147
    %p154 = scmp.eq.s32.totalorder %s16, 1
    %p155 = por %p153, %p154
    %p156 = scmp.ne.s32.totalorder %s148, %s151
    %p157 = scmp.eq.s32.totalorder %s16, 0
    %p158 = por %p156, %p157
    %p159 = scmp.ne.s32.totalorder %s148, %s151
    %p160 = scmp.eq.s32.totalorder %s21, 1
    %p161 = por %p159, %p160
    %p162 = scmp.ne.s32.totalorder %s151, %s152
    %p163 = scmp.eq.s32.totalorder %s21, 0
    %p164 = por %p162, %p163
    %p165 = scmp.ne.s32.totalorder %s151, %s152
    %p166 = scmp.eq.s32.totalorder %s22, 1
    %p167 = por %p165, %p166
    %p169 = scmp.ne.s32.totalorder %s152, %s168
    %p170 = scmp.eq.s32.totalorder %s22, 0
    %p171 = por %p169, %p170
    %s173 = sadd.s32 %s172, 1
    %p176 = scmp.eq.s32.totalorder %s16, 1
    %p177 = scmp.ne.s32.totalorder %s172, %s174
    %p178 = scmp.eq.s32.totalorder %s16, 0
    %p179 = por %p177, %p178
    %p180 = scmp.ne.s32.totalorder %s172, %s174
    %p181 = scmp.eq.s32.totalorder %s21, 1
    %p182 = por %p180, %p181
    %p183 = scmp.ne.s32.totalorder %s174, %s175
    %p184 = scmp.eq.s32.totalorder %s21, 0
    %p185 = por %p183, %p184
    %p186 = scmp.ne.s32.totalorder %s174, %s175
    %p187 = scmp.eq.s32.totalorder %s22, 1
    %p188 = por %p186, %p187
    %p190 = scmp.ne.s32.totalorder %s175, %s189
    %p191 = scmp.eq.s32.totalorder %s22, 0
    %p192 = por %p190, %p191
    %s194 = sadd.s32 %s193, 1
    %p197 = scmp.eq.s32.totalorder %s16, 1
    %p198 = scmp.ne.s32.totalorder %s193, %s195
    %p199 = scmp.eq.s32.totalorder %s16, 0
    %p200 = por %p198, %p199
    %p201 = scmp.ne.s32.totalorder %s193, %s195
    %p202 = scmp.eq.s32.totalorder %s21, 1
    %p203 = por %p201, %p202
    %p204 = scmp.ne.s32.totalorder %s195, %s196
    %p205 = scmp.eq.s32.totalorder %s21, 0
    %p206 = por %p204, %p205
    %p207 = scmp.ne.s32.totalorder %s195, %s196
    %p208 = scmp.eq.s32.totalorder %s22, 1
    %p209 = por %p207, %p208
    %p211 = scmp.ne.s32.totalorder %s196, %s210
    %p212 = scmp.eq.s32.totalorder %s22, 0
    %p213 = por %p211, %p212
    %s214 = ssub.s32 %s23, %s35
    %s215 = ssub.s32 %s24, %s31
    %s216 = sor.u32 %s214, %s215
    %p217 = scmp.eq.s32.totalorder %s216, 0
    %s219 = sadd.s32 %s218, 1
    %s220 = scalar_select %p217, %s218, %s219
    %p223 = pneg %p217
    %p224 = scmp.eq.s32.totalorder %s16, 1
    %p225 = por %p223, %p224
    %p226 = scmp.ne.s32.totalorder %s218, %s221
    %p227 = scmp.eq.s32.totalorder %s16, 0
    %p228 = por %p226, %p227
    %p229 = scmp.ne.s32.totalorder %s218, %s221
    %p230 = scmp.eq.s32.totalorder %s21, 1
    %p231 = por %p229, %p230
    %p232 = scmp.ne.s32.totalorder %s221, %s222
    %p233 = scmp.eq.s32.totalorder %s21, 0
    %p234 = por %p232, %p233
    %p235 = scmp.ne.s32.totalorder %s221, %s222
    %p236 = scmp.eq.s32.totalorder %s22, 1
    %p237 = por %p235, %p236
    %p239 = scmp.ne.s32.totalorder %s222, %s238
    %p240 = scmp.eq.s32.totalorder %s22, 0
    %p241 = por %p239, %p240
    %s242 = ssub.s32 %s23, %s35
    %s243 = ssub.s32 %s24, %s31
    %s244 = sor.u32 %s242, %s243
    %p245 = scmp.eq.s32.totalorder %s244, 0
    %s247 = sadd.s32 %s246, 1
    %s248 = scalar_select %p245, %s246, %s247
    %p251 = pneg %p245
    %p252 = scmp.eq.s32.totalorder %s16, 1
    %p253 = por %p251, %p252
    %p254 = scmp.ne.s32.totalorder %s246, %s249
    %p255 = scmp.eq.s32.totalorder %s16, 0
    %p256 = por %p254, %p255
    %p257 = scmp.ne.s32.totalorder %s246, %s249
    %p258 = scmp.eq.s32.totalorder %s21, 1
    %p259 = por %p257, %p258
    %p260 = scmp.ne.s32.totalorder %s249, %s250
    %p261 = scmp.eq.s32.totalorder %s21, 0
    %p262 = por %p260, %p261
    %p263 = scmp.ne.s32.totalorder %s249, %s250
    %p264 = scmp.eq.s32.totalorder %s22, 1
    %p265 = por %p263, %p264
    %p267 = scmp.ne.s32.totalorder %s250, %s266
    %p268 = scmp.eq.s32.totalorder %s22, 0
    %p269 = por %p267, %p268
    %s270 = ssub.s32 %s23, %s35
    %s271 = ssub.s32 %s24, %s31
    %s272 = sor.u32 %s270, %s271
    %p273 = scmp.eq.s32.totalorder %s272, 0
    %s275 = sadd.s32 %s274, 1
    %s276 = scalar_select %p273, %s274, %s275
    %p279 = pneg %p273
    %p280 = scmp.eq.s32.totalorder %s16, 1
    %p281 = por %p279, %p280
    %p282 = scmp.ne.s32.totalorder %s274, %s277
    %p283 = scmp.eq.s32.totalorder %s16, 0
    %p284 = por %p282, %p283
    %p285 = scmp.ne.s32.totalorder %s274, %s277
    %p286 = scmp.eq.s32.totalorder %s21, 1
    %p287 = por %p285, %p286
    %p288 = scmp.ne.s32.totalorder %s277, %s278
    %p289 = scmp.eq.s32.totalorder %s21, 0
    %p290 = por %p288, %p289
    %p291 = scmp.ne.s32.totalorder %s277, %s278
    %p292 = scmp.eq.s32.totalorder %s22, 1
    %p293 = por %p291, %p292
    %p295 = scmp.ne.s32.totalorder %s278, %s294
    %p296 = scmp.eq.s32.totalorder %s22, 0
    %p297 = por %p295, %p296
    %p298 = scmp.le.s32.totalorder 1, %s16
    %p299 = scmp.lt.s32.totalorder %s16, 3
    %p300 = pnand %p298, %p299
    %p301 = pneg %p300
    // Predicated region
    $region9: #{senet_shared_forward.3} parent=5 // pred_check
      _
    $region10: #{senet_shared_forward.3} parent=5 // pred_check_branch
      %303 = sbr.rel (%p300) target = $region12
    $region11: #{senet_shared_forward.3} parent=5 // pred_region
      %s304 = ssub.s32 %s16, 1
      // Predicated region
      $region13: #{senet_shared_forward.3} parent=11 // pred_check
        %p305 = pneg %p185
      $region14: #{senet_shared_forward.3} parent=11 // pred_check_branch
        %307 = sbr.rel (%p305) target = $region16
      $region15: #{senet_shared_forward.3} parent=11 // pred_region
        _
      $region16: #{senet_shared_forward.3} parent=11 // pred_fallthru
        _
      // Predicated region
      $region17: #{senet_shared_forward.3} parent=11 // pred_check
        %p308 = pneg %p206
      $region18: #{senet_shared_forward.3} parent=11 // pred_check_branch
        %310 = sbr.rel (%p308) target = $region20
      $region19: #{senet_shared_forward.3} parent=11 // pred_region
        _
      $region20: #{senet_shared_forward.3} parent=11 // pred_fallthru
        _
    $region12: #{senet_shared_forward.3} parent=5 // pred_fallthru
      _
    %p311 = scmp.lt.s32.totalorder %s16, 2
    // Predicated region
    $region21: #{senet_shared_forward.3} parent=5 // pred_check
      %p312 = pneg %p311
    $region22: #{senet_shared_forward.3} parent=5 // pred_check_branch
      %314 = sbr.rel (%p312) target = $region24
    $region23: #{senet_shared_forward.3} parent=5 // pred_region
      // Predicated region
      $region25: #{senet_shared_forward.3} parent=23 // pred_check
        %p315 = pneg %p50
      $region26: #{senet_shared_forward.3} parent=23 // pred_check_branch
        %317 = sbr.rel (%p315) target = $region28
      $region27: #{senet_shared_forward.3} parent=23 // pred_region
        %p318 = scmp.lt.s32.totalorder %s23, 1
        %s319 = scalar_select %p318, %s23, 1
        %p320 = scmp.lt.s32.totalorder %s24, 0
        %s321 = scalar_select %p320, %s24, 0
        %s322 = smul.addr %s319, 16
        %s323 = sadd.s32 %s321, %s322
        %s324 = smul.addr %s323, 8
        %s325 = scalar_lea.vmem %s0, %s324
      $region28: #{senet_shared_forward.3} parent=23 // pred_fallthru
        _
      // Predicated region
      $region29: #{senet_shared_forward.3} parent=23 // pred_check
        %p326 = pneg %p78
      $region30: #{senet_shared_forward.3} parent=23 // pred_check_branch
        %328 = sbr.rel (%p326) target = $region32
      $region31: #{senet_shared_forward.3} parent=23 // pred_region
        %p329 = scmp.lt.s32.totalorder %s23, 1
        %s330 = scalar_select %p329, %s23, 1
        %p331 = scmp.lt.s32.totalorder %s24, 0
        %s332 = scalar_select %p331, %s24, 0
        %s333 = smul.addr %s330, 16
        %s334 = sadd.s32 %s332, %s333
        %s335 = smul.addr %s334, 8
        %s336 = scalar_lea.vmem %s1, %s335
      $region32: #{senet_shared_forward.3} parent=23 // pred_fallthru
        _
      // Predicated region
      $region33: #{senet_shared_forward.3} parent=23 // pred_check
        %p337 = pneg %p106
      $region34: #{senet_shared_forward.3} parent=23 // pred_check_branch
        %339 = sbr.rel (%p337) target = $region36
      $region35: #{senet_shared_forward.3} parent=23 // pred_region
        %p340 = scmp.lt.s32.totalorder %s23, 1
        %s341 = scalar_select %p340, %s23, 1
        %p342 = scmp.lt.s32.totalorder %s24, 0
        %s343 = scalar_select %p342, %s24, 0
        %s344 = smul.addr %s341, 16
        %s345 = sadd.s32 %s343, %s344
        %s346 = smul.addr %s345, 8
        %s347 = scalar_lea.vmem %s2, %s346
      $region36: #{senet_shared_forward.3} parent=23 // pred_fallthru
        _
      // Predicated region
      $region37: #{senet_shared_forward.3} parent=23 // pred_check
        %p348 = pneg %p132
      $region38: #{senet_shared_forward.3} parent=23 // pred_check_branch
        %350 = sbr.rel (%p348) target = $region40
      $region39: #{senet_shared_forward.3} parent=23 // pred_region
        %p351 = scmp.lt.s32.totalorder %s23, 1
        %s352 = scalar_select %p351, %s23, 1
        %s353 = smul.addr %s352, 16
        %s354 = smul.addr %s353, 8
        %s355 = scalar_lea.vmem %s3, %s354
      $region40: #{senet_shared_forward.3} parent=23 // pred_fallthru
        _
      // Predicated region
      $region41: #{senet_shared_forward.3} parent=23 // pred_check
        %p356 = pneg %p158
      $region42: #{senet_shared_forward.3} parent=23 // pred_check_branch
        %358 = sbr.rel (%p356) target = $region44
      $region43: #{senet_shared_forward.3} parent=23 // pred_region
        %p359 = scmp.lt.s32.totalorder %s23, 1
        %s360 = scalar_select %p359, %s23, 1
        %s361 = smul.addr %s360, 16
        %s362 = smul.addr %s361, 8
        %s363 = scalar_lea.vmem %s4, %s362
      $region44: #{senet_shared_forward.3} parent=23 // pred_fallthru
        _
    $region24: #{senet_shared_forward.3} parent=5 // pred_fallthru
      _
    %p364 = scmp.le.s32.totalorder 1, %s16
    %p365 = scmp.lt.s32.totalorder %s16, 3
    %p366 = pnand %p364, %p365
    %p367 = pneg %p366
    // Predicated region
    $region45: #{senet_shared_forward.3} parent=5 // pred_check
      _
    $region46: #{senet_shared_forward.3} parent=5 // pred_check_branch
      %369 = sbr.rel (%p366) target = $region48
    $region47: #{senet_shared_forward.3} parent=5 // pred_region
      %s370 = ssub.s32 %s16, 1
      %p371 = scmp.lt.s32.totalorder %s25, 1
      %s372 = scalar_select %p371, %s25, 1
      %p373 = scmp.lt.s32.totalorder %s26, 0
      %s374 = scalar_select %p373, %s26, 0
      %s375 = smul.addr %s372, 16
      %s376 = sadd.s32 %s374, %s375
      %s377 = smul.addr %s376, 8
      %s378 = scalar_lea.vmem %s0, %s377
      %p379 = pneg %p56
      %p380 = pneg %p53
      %p381 = scmp.lt.s32.totalorder %s25, 1
      %s382 = scalar_select %p381, %s25, 1
      %p383 = scmp.lt.s32.totalorder %s26, 0
      %s384 = scalar_select %p383, %s26, 0
      %s385 = smul.addr %s382, 16
      %s386 = sadd.s32 %s384, %s385
      %s387 = smul.addr %s386, 8
      %s388 = scalar_lea.vmem %s1, %s387
      %p389 = pneg %p84
      %p390 = pneg %p81
      %p391 = scmp.lt.s32.totalorder %s25, 1
      %s392 = scalar_select %p391, %s25, 1
      %p393 = scmp.lt.s32.totalorder %s26, 0
      %s394 = scalar_select %p393, %s26, 0
      %s395 = smul.addr %s392, 16
      %s396 = sadd.s32 %s394, %s395
      %s397 = smul.addr %s396, 8
      %s398 = scalar_lea.vmem %s2, %s397
      %p399 = pneg %p112
      %p400 = pneg %p109
      %p401 = scmp.lt.s32.totalorder %s25, 1
      %s402 = scalar_select %p401, %s25, 1
      %s403 = smul.addr %s402, 16
      %s404 = smul.addr %s403, 8
      %s405 = scalar_lea.vmem %s3, %s404
      %p406 = pneg %p138
      %p407 = pneg %p135
      %p408 = scmp.lt.s32.totalorder %s25, 1
      %s409 = scalar_select %p408, %s25, 1
      %s410 = smul.addr %s409, 16
      %s411 = smul.addr %s410, 8
      %s412 = scalar_lea.vmem %s4, %s411
      %p413 = pneg %p164
      %p414 = pneg %p161
      %p415 = pneg %p185
      %p416 = pneg %p182
      %p417 = pneg %p206
      %p418 = pneg %p203
      %p419 = pneg %p234
      %p420 = pneg %p231
      %p421 = scmp.lt.s32.totalorder %s25, 1
      %s422 = scalar_select %p421, %s25, 1
      %p423 = scmp.lt.s32.totalorder %s26, 0
      %s424 = scalar_select %p423, %s26, 0
      %s425 = smul.addr %s422, 16
      %s426 = sadd.s32 %s424, %s425
      %s427 = smul.addr %s426, 8
      %s428 = scalar_lea.vmem %s7, %s427
      %p429 = pneg %p262
      %p430 = pneg %p259
      %p431 = scmp.lt.s32.totalorder %s25, 1
      %s432 = scalar_select %p431, %s25, 1
      %p433 = scmp.lt.s32.totalorder %s26, 0
      %s434 = scalar_select %p433, %s26, 0
      %s435 = smul.addr %s432, 16
      %s436 = sadd.s32 %s434, %s435
      %s437 = smul.addr %s436, 8
      %s438 = scalar_lea.vmem %s8, %s437
      %p439 = pneg %p290
      %p440 = pneg %p287
      %p441 = scmp.lt.s32.totalorder %s25, 1
      %s442 = scalar_select %p441, %s25, 1
      %p443 = scmp.lt.s32.totalorder %s26, 0
      %s444 = scalar_select %p443, %s26, 0
      %s445 = smul.addr %s442, 16
      %s446 = sadd.s32 %s444, %s445
      %s447 = smul.addr %s446, 8
      %s448 = scalar_lea.vmem %s9, %s447
      %p449 = scmp.lt.s32.totalorder %s25, 1
      %s450 = scalar_select %p449, %s25, 1
      %p451 = scmp.lt.s32.totalorder %s26, 0
      %s452 = scalar_select %p451, %s26, 0
      %s453 = smul.addr %s450, 16
      %s454 = sadd.s32 %s452, %s453
      %s455 = smul.addr %s454, 8
      %s456 = scalar_lea.vmem %s0, %s455
      %p457 = scmp.lt.s32.totalorder %s25, 1
      %s458 = scalar_select %p457, %s25, 1
      %p459 = scmp.lt.s32.totalorder %s26, 0
      %s460 = scalar_select %p459, %s26, 0
      %s461 = smul.addr %s458, 16
      %s462 = sadd.s32 %s460, %s461
      %s463 = smul.addr %s462, 8
      %s464 = scalar_lea.vmem %s1, %s463
      %p465 = scmp.lt.s32.totalorder %s25, 1
      %s466 = scalar_select %p465, %s25, 1
      %p467 = scmp.lt.s32.totalorder %s26, 0
      %s468 = scalar_select %p467, %s26, 0
      %s469 = smul.addr %s466, 16
      %s470 = sadd.s32 %s468, %s469
      %s471 = smul.addr %s470, 8
      %s472 = scalar_lea.vmem %s2, %s471
      %p473 = scmp.lt.s32.totalorder %s25, 1
      %s474 = scalar_select %p473, %s25, 1
      %s475 = smul.addr %s474, 16
      %s476 = smul.addr %s475, 8
      %s477 = scalar_lea.vmem %s3, %s476
      %p478 = scmp.lt.s32.totalorder %s25, 1
      %s479 = scalar_select %p478, %s25, 1
      %s480 = smul.addr %s479, 16
      %s481 = smul.addr %s480, 8
      %s482 = scalar_lea.vmem %s4, %s481
      %p483 = scmp.lt.s32.totalorder %s25, 1
      %s484 = scalar_select %p483, %s25, 1
      %p485 = scmp.lt.s32.totalorder %s26, 0
      %s486 = scalar_select %p485, %s26, 0
      %s487 = smul.addr %s484, 16
      %s488 = sadd.s32 %s486, %s487
      %s489 = smul.addr %s488, 8
      %s490 = scalar_lea.vmem %s7, %s489
      %p491 = scmp.lt.s32.totalorder %s25, 1
      %s492 = scalar_select %p491, %s25, 1
      %p493 = scmp.lt.s32.totalorder %s26, 0
      %s494 = scalar_select %p493, %s26, 0
      %s495 = smul.addr %s492, 16
      %s496 = sadd.s32 %s494, %s495
      %s497 = smul.addr %s496, 8
      %s498 = scalar_lea.vmem %s8, %s497
      %p499 = scmp.lt.s32.totalorder %s25, 1
      %s500 = scalar_select %p499, %s25, 1
      %p501 = scmp.lt.s32.totalorder %s26, 0
      %s502 = scalar_select %p501, %s26, 0
      %s503 = smul.addr %s500, 16
      %s504 = sadd.s32 %s502, %s503
      %s505 = smul.addr %s504, 8
      %s506 = scalar_lea.vmem %s9, %s505
      %v507 = vld [vmem:[%s477] sm:$0xff]
      %v508 = vld [vmem:[%s477 + $0x8] sm:$0xff]
      %v509 = vld [vmem:[%s477 + $0x10] sm:$0xff]
      %v510 = vld [vmem:[%s477 + $0x18] sm:$0xff]
      %v511 = vld [vmem:[%s477 + $0x20] sm:$0xff]
      %v512 = vld [vmem:[%s477 + $0x28] sm:$0xff]
      %v513 = vld [vmem:[%s477 + $0x30] sm:$0xff]
      %v514 = vld [vmem:[%s477 + $0x38] sm:$0xff]
      %v515 = vld [vmem:[%s477 + $0x40] sm:$0xff]
      %v516 = vld [vmem:[%s477 + $0x48] sm:$0xff]
      %v517 = vld [vmem:[%s477 + $0x50] sm:$0xff]
      %v518 = vld [vmem:[%s477 + $0x58] sm:$0xff]
      %v519 = vld [vmem:[%s477 + $0x60] sm:$0xff]
      %v520 = vld [vmem:[%s477 + $0x68] sm:$0xff]
      %v521 = vld [vmem:[%s477 + $0x70] sm:$0xff]
      %v522 = vld [vmem:[%s477 + $0x78] sm:$0xff]
      %v523 = vld [vmem:[%s482] sm:$0xff]
      %v524 = vld [vmem:[%s482 + $0x8] sm:$0xff]
      %v525 = vld [vmem:[%s482 + $0x10] sm:$0xff]
      %v526 = vld [vmem:[%s482 + $0x18] sm:$0xff]
      %v527 = vld [vmem:[%s482 + $0x20] sm:$0xff]
      %v528 = vld [vmem:[%s482 + $0x28] sm:$0xff]
      %v529 = vld [vmem:[%s482 + $0x30] sm:$0xff]
      %v530 = vld [vmem:[%s482 + $0x38] sm:$0xff]
      %v531 = vld [vmem:[%s482 + $0x40] sm:$0xff]
      %v532 = vld [vmem:[%s482 + $0x48] sm:$0xff]
      %v533 = vld [vmem:[%s482 + $0x50] sm:$0xff]
      %v534 = vld [vmem:[%s482 + $0x58] sm:$0xff]
      %v535 = vld [vmem:[%s482 + $0x60] sm:$0xff]
      %v536 = vld [vmem:[%s482 + $0x68] sm:$0xff]
      %v537 = vld [vmem:[%s482 + $0x70] sm:$0xff]
      %v538 = vld [vmem:[%s482 + $0x78] sm:$0xff]
      %v539 = vld [vmem:[%s456] sm:$0xff]
      %v540 = vld [vmem:[%s456 + $0x8] sm:$0xff]
      %v541 = vld [vmem:[%s456 + $0x10] sm:$0xff]
      %v542 = vld [vmem:[%s456 + $0x18] sm:$0xff]
      %v543 = vld [vmem:[%s456 + $0x20] sm:$0xff]
      %v544 = vld [vmem:[%s456 + $0x28] sm:$0xff]
      %v545 = vld [vmem:[%s456 + $0x30] sm:$0xff]
      %v546 = vld [vmem:[%s456 + $0x38] sm:$0xff]
      %v547 = vld [vmem:[%s456 + $0x40] sm:$0xff]
      %v548 = vld [vmem:[%s456 + $0x48] sm:$0xff]
      %v549 = vld [vmem:[%s456 + $0x50] sm:$0xff]
      %v550 = vld [vmem:[%s456 + $0x58] sm:$0xff]
      %v551 = vld [vmem:[%s456 + $0x60] sm:$0xff]
      %v552 = vld [vmem:[%s456 + $0x68] sm:$0xff]
      %v553 = vld [vmem:[%s456 + $0x70] sm:$0xff]
      %v554 = vld [vmem:[%s456 + $0x78] sm:$0xff]
      %v555 = vadd.f32 %v539, 1.0
      %v556 = vadd.f32 %v540, 1.0
      %v557 = vadd.f32 %v541, 1.0
      %v558 = vadd.f32 %v542, 1.0
      %v559 = vadd.f32 %v543, 1.0
      %v560 = vadd.f32 %v544, 1.0
      %v561 = vadd.f32 %v545, 1.0
      %v562 = vadd.f32 %v546, 1.0
      %v563 = vadd.f32 %v547, 1.0
      %v564 = vadd.f32 %v548, 1.0
      %v565 = vadd.f32 %v549, 1.0
      %v566 = vadd.f32 %v550, 1.0
      %v567 = vadd.f32 %v551, 1.0
      %v568 = vadd.f32 %v552, 1.0
      %v569 = vadd.f32 %v553, 1.0
      %v570 = vadd.f32 %v554, 1.0
      %572 = vset.pattern.permute.xlu0 0
      %573 = vperm.xlu0 %572, %v507
      %v574 = vpop.permute.xlu0 %573
      %577 = vset.pattern.permute.xlu0 0
      %578 = vperm.xlu0 %577, %v508
      %v579 = vpop.permute.xlu0 %578
      %582 = vset.pattern.permute.xlu0 0
      %583 = vperm.xlu0 %582, %v509
      %v584 = vpop.permute.xlu0 %583
      %587 = vset.pattern.permute.xlu0 0
      %588 = vperm.xlu0 %587, %v510
      %v589 = vpop.permute.xlu0 %588
      %592 = vset.pattern.permute.xlu0 0
      %593 = vperm.xlu0 %592, %v511
      %v594 = vpop.permute.xlu0 %593
      %597 = vset.pattern.permute.xlu0 0
      %598 = vperm.xlu0 %597, %v512
      %v599 = vpop.permute.xlu0 %598
      %602 = vset.pattern.permute.xlu0 0
      %603 = vperm.xlu0 %602, %v513
      %v604 = vpop.permute.xlu0 %603
      %607 = vset.pattern.permute.xlu0 0
      %608 = vperm.xlu0 %607, %v514
      %v609 = vpop.permute.xlu0 %608
      %612 = vset.pattern.permute.xlu0 0
      %613 = vperm.xlu0 %612, %v515
      %v614 = vpop.permute.xlu0 %613
      %617 = vset.pattern.permute.xlu0 0
      %618 = vperm.xlu0 %617, %v516
      %v619 = vpop.permute.xlu0 %618
      %622 = vset.pattern.permute.xlu0 0
      %623 = vperm.xlu0 %622, %v517
      %v624 = vpop.permute.xlu0 %623
      %627 = vset.pattern.permute.xlu0 0
      %628 = vperm.xlu0 %627, %v518
      %v629 = vpop.permute.xlu0 %628
      %632 = vset.pattern.permute.xlu0 0
      %633 = vperm.xlu0 %632, %v519
      %v634 = vpop.permute.xlu0 %633
      %637 = vset.pattern.permute.xlu0 0
      %638 = vperm.xlu0 %637, %v520
      %v639 = vpop.permute.xlu0 %638
      %642 = vset.pattern.permute.xlu0 0
      %643 = vperm.xlu0 %642, %v521
      %v644 = vpop.permute.xlu0 %643
      %647 = vset.pattern.permute.xlu0 0
      %648 = vperm.xlu0 %647, %v522
      %v649 = vpop.permute.xlu0 %648
      %v651 = vmul.f32 %v555, %v574
      %v652 = vmul.f32 %v556, %v579
      %v653 = vmul.f32 %v557, %v584
      %v654 = vmul.f32 %v558, %v589
      %v655 = vmul.f32 %v559, %v594
      %v656 = vmul.f32 %v560, %v599
      %v657 = vmul.f32 %v561, %v604
      %v658 = vmul.f32 %v562, %v609
      %v659 = vmul.f32 %v563, %v614
      %v660 = vmul.f32 %v564, %v619
      %v661 = vmul.f32 %v565, %v624
      %v662 = vmul.f32 %v566, %v629
      %v663 = vmul.f32 %v567, %v634
      %v664 = vmul.f32 %v568, %v639
      %v665 = vmul.f32 %v569, %v644
      %v666 = vmul.f32 %v570, %v649
      %667 = vst [vmem:[%s490] sm:$0xff] %v651
      %668 = vst [vmem:[%s490 + $0x8] sm:$0xff] %v652
      %669 = vst [vmem:[%s490 + $0x10] sm:$0xff] %v653
      %670 = vst [vmem:[%s490 + $0x18] sm:$0xff] %v654
      %671 = vst [vmem:[%s490 + $0x20] sm:$0xff] %v655
      %672 = vst [vmem:[%s490 + $0x28] sm:$0xff] %v656
      %673 = vst [vmem:[%s490 + $0x30] sm:$0xff] %v657
      %674 = vst [vmem:[%s490 + $0x38] sm:$0xff] %v658
      %675 = vst [vmem:[%s490 + $0x40] sm:$0xff] %v659
      %676 = vst [vmem:[%s490 + $0x48] sm:$0xff] %v660
      %677 = vst [vmem:[%s490 + $0x50] sm:$0xff] %v661
      %678 = vst [vmem:[%s490 + $0x58] sm:$0xff] %v662
      %679 = vst [vmem:[%s490 + $0x60] sm:$0xff] %v663
      %680 = vst [vmem:[%s490 + $0x68] sm:$0xff] %v664
      %681 = vst [vmem:[%s490 + $0x70] sm:$0xff] %v665
      %682 = vst [vmem:[%s490 + $0x78] sm:$0xff] %v666
      %v683 = vld [vmem:[%s464] sm:$0xff]
      %v684 = vld [vmem:[%s464 + $0x8] sm:$0xff]
      %v685 = vld [vmem:[%s464 + $0x10] sm:$0xff]
      %v686 = vld [vmem:[%s464 + $0x18] sm:$0xff]
      %v687 = vld [vmem:[%s464 + $0x20] sm:$0xff]
      %v688 = vld [vmem:[%s464 + $0x28] sm:$0xff]
      %v689 = vld [vmem:[%s464 + $0x30] sm:$0xff]
      %v690 = vld [vmem:[%s464 + $0x38] sm:$0xff]
      %v691 = vld [vmem:[%s464 + $0x40] sm:$0xff]
      %v692 = vld [vmem:[%s464 + $0x48] sm:$0xff]
      %v693 = vld [vmem:[%s464 + $0x50] sm:$0xff]
      %v694 = vld [vmem:[%s464 + $0x58] sm:$0xff]
      %v695 = vld [vmem:[%s464 + $0x60] sm:$0xff]
      %v696 = vld [vmem:[%s464 + $0x68] sm:$0xff]
      %v697 = vld [vmem:[%s464 + $0x70] sm:$0xff]
      %v698 = vld [vmem:[%s464 + $0x78] sm:$0xff]
      %v699 = vadd.f32 %v683, 1.0
      %v700 = vadd.f32 %v684, 1.0
      %v701 = vadd.f32 %v685, 1.0
      %v702 = vadd.f32 %v686, 1.0
      %v703 = vadd.f32 %v687, 1.0
      %v704 = vadd.f32 %v688, 1.0
      %v705 = vadd.f32 %v689, 1.0
      %v706 = vadd.f32 %v690, 1.0
      %v707 = vadd.f32 %v691, 1.0
      %v708 = vadd.f32 %v692, 1.0
      %v709 = vadd.f32 %v693, 1.0
      %v710 = vadd.f32 %v694, 1.0
      %v711 = vadd.f32 %v695, 1.0
      %v712 = vadd.f32 %v696, 1.0
      %v713 = vadd.f32 %v697, 1.0
      %v714 = vadd.f32 %v698, 1.0
      %716 = vset.pattern.permute.xlu0 0
      %717 = vperm.xlu0 %716, %v523
      %v718 = vpop.permute.xlu0 %717
      %721 = vset.pattern.permute.xlu0 0
      %722 = vperm.xlu0 %721, %v524
      %v723 = vpop.permute.xlu0 %722
      %726 = vset.pattern.permute.xlu0 0
      %727 = vperm.xlu0 %726, %v525
      %v728 = vpop.permute.xlu0 %727
      %731 = vset.pattern.permute.xlu0 0
      %732 = vperm.xlu0 %731, %v526
      %v733 = vpop.permute.xlu0 %732
      %736 = vset.pattern.permute.xlu0 0
      %737 = vperm.xlu0 %736, %v527
      %v738 = vpop.permute.xlu0 %737
      %741 = vset.pattern.permute.xlu0 0
      %742 = vperm.xlu0 %741, %v528
      %v743 = vpop.permute.xlu0 %742
      %746 = vset.pattern.permute.xlu0 0
      %747 = vperm.xlu0 %746, %v529
      %v748 = vpop.permute.xlu0 %747
      %751 = vset.pattern.permute.xlu0 0
      %752 = vperm.xlu0 %751, %v530
      %v753 = vpop.permute.xlu0 %752
      %756 = vset.pattern.permute.xlu0 0
      %757 = vperm.xlu0 %756, %v531
      %v758 = vpop.permute.xlu0 %757
      %761 = vset.pattern.permute.xlu0 0
      %762 = vperm.xlu0 %761, %v532
      %v763 = vpop.permute.xlu0 %762
      %766 = vset.pattern.permute.xlu0 0
      %767 = vperm.xlu0 %766, %v533
      %v768 = vpop.permute.xlu0 %767
      %771 = vset.pattern.permute.xlu0 0
      %772 = vperm.xlu0 %771, %v534
      %v773 = vpop.permute.xlu0 %772
      %776 = vset.pattern.permute.xlu0 0
      %777 = vperm.xlu0 %776, %v535
      %v778 = vpop.permute.xlu0 %777
      %781 = vset.pattern.permute.xlu0 0
      %782 = vperm.xlu0 %781, %v536
      %v783 = vpop.permute.xlu0 %782
      %786 = vset.pattern.permute.xlu0 0
      %787 = vperm.xlu0 %786, %v537
      %v788 = vpop.permute.xlu0 %787
      %791 = vset.pattern.permute.xlu0 0
      %792 = vperm.xlu0 %791, %v538
      %v793 = vpop.permute.xlu0 %792
      %v795 = vmul.f32 %v699, %v718
      %v796 = vmul.f32 %v700, %v723
      %v797 = vmul.f32 %v701, %v728
      %v798 = vmul.f32 %v702, %v733
      %v799 = vmul.f32 %v703, %v738
      %v800 = vmul.f32 %v704, %v743
      %v801 = vmul.f32 %v705, %v748
      %v802 = vmul.f32 %v706, %v753
      %v803 = vmul.f32 %v707, %v758
      %v804 = vmul.f32 %v708, %v763
      %v805 = vmul.f32 %v709, %v768
      %v806 = vmul.f32 %v710, %v773
      %v807 = vmul.f32 %v711, %v778
      %v808 = vmul.f32 %v712, %v783
      %v809 = vmul.f32 %v713, %v788
      %v810 = vmul.f32 %v714, %v793
      %811 = vst [vmem:[%s498] sm:$0xff] %v795
      %812 = vst [vmem:[%s498 + $0x8] sm:$0xff] %v796
      %813 = vst [vmem:[%s498 + $0x10] sm:$0xff] %v797
      %814 = vst [vmem:[%s498 + $0x18] sm:$0xff] %v798
      %815 = vst [vmem:[%s498 + $0x20] sm:$0xff] %v799
      %816 = vst [vmem:[%s498 + $0x28] sm:$0xff] %v800
      %817 = vst [vmem:[%s498 + $0x30] sm:$0xff] %v801
      %818 = vst [vmem:[%s498 + $0x38] sm:$0xff] %v802
      %819 = vst [vmem:[%s498 + $0x40] sm:$0xff] %v803
      %820 = vst [vmem:[%s498 + $0x48] sm:$0xff] %v804
      %821 = vst [vmem:[%s498 + $0x50] sm:$0xff] %v805
      %822 = vst [vmem:[%s498 + $0x58] sm:$0xff] %v806
      %823 = vst [vmem:[%s498 + $0x60] sm:$0xff] %v807
      %824 = vst [vmem:[%s498 + $0x68] sm:$0xff] %v808
      %825 = vst [vmem:[%s498 + $0x70] sm:$0xff] %v809
      %826 = vst [vmem:[%s498 + $0x78] sm:$0xff] %v810
      %v827 = vld [vmem:[%s472] sm:$0xff]
      %v828 = vld [vmem:[%s472 + $0x8] sm:$0xff]
      %v829 = vld [vmem:[%s472 + $0x10] sm:$0xff]
      %v830 = vld [vmem:[%s472 + $0x18] sm:$0xff]
      %v831 = vld [vmem:[%s472 + $0x20] sm:$0xff]
      %v832 = vld [vmem:[%s472 + $0x28] sm:$0xff]
      %v833 = vld [vmem:[%s472 + $0x30] sm:$0xff]
      %v834 = vld [vmem:[%s472 + $0x38] sm:$0xff]
      %v835 = vld [vmem:[%s472 + $0x40] sm:$0xff]
      %v836 = vld [vmem:[%s472 + $0x48] sm:$0xff]
      %v837 = vld [vmem:[%s472 + $0x50] sm:$0xff]
      %v838 = vld [vmem:[%s472 + $0x58] sm:$0xff]
      %v839 = vld [vmem:[%s472 + $0x60] sm:$0xff]
      %v840 = vld [vmem:[%s472 + $0x68] sm:$0xff]
      %v841 = vld [vmem:[%s472 + $0x70] sm:$0xff]
      %v842 = vld [vmem:[%s472 + $0x78] sm:$0xff]
      %v843 = vld [vmem:[%s5] sm:$0xff]
      %844 = vmatprep.subr.mxu0 0.0
      %845 = vmatpush1.msra.mxu0 %v842
      %846 = vmatprep.subr.mxu0 0.0
      %847 = vmatpush1.msra.mxu0 %v841
      %848 = vmatprep.subr.mxu0 0.0
      %849 = vmatpush1.msra.mxu0 %v840
      %850 = vmatprep.subr.mxu0 0.0
      %851 = vmatpush1.msra.mxu0 %v839
      %852 = vmatprep.subr.mxu0 0.0
      %853 = vmatpush1.msra.mxu0 %v838
      %854 = vmatprep.subr.mxu0 0.0
      %855 = vmatpush1.msra.mxu0 %v837
      %856 = vmatprep.subr.mxu0 0.0
      %857 = vmatpush1.msra.mxu0 %v836
      %858 = vmatprep.subr.mxu0 0.0
      %859 = vmatpush1.msra.mxu0 %v835
      %860 = vmatprep.subr.mxu0 0.0
      %861 = vmatpush1.msra.mxu0 %v834
      %862 = vmatprep.subr.mxu0 0.0
      %863 = vmatpush1.msra.mxu0 %v833
      %864 = vmatprep.subr.mxu0 0.0
      %865 = vmatpush1.msra.mxu0 %v832
      %866 = vmatprep.subr.mxu0 0.0
      %867 = vmatpush1.msra.mxu0 %v831
      %868 = vmatprep.subr.mxu0 0.0
      %869 = vmatpush1.msra.mxu0 %v830
      %870 = vmatprep.subr.mxu0 0.0
      %871 = vmatpush1.msra.mxu0 %v829
      %872 = vmatprep.subr.mxu0 0.0
      %873 = vmatpush1.msra.mxu0 %v828
      %874 = vmatprep.subr.mxu0 0.0
      %875 = vmatpush1.msra.mxu0 %v827
      %876 = vmatprep.subr.mxu0 0.0
      %877 = vmatpush2.msra.mxu0 0.0
      %878 = vmatprep.subr.mxu0 0.0
      %879 = vmatpush2.msra.mxu0 0.0
      %880 = vmatprep.subr.mxu0 0.0
      %881 = vmatpush2.msra.mxu0 0.0
      %882 = vmatprep.subr.mxu0 0.0
      %883 = vmatpush2.msra.mxu0 0.0
      %884 = vmatprep.subr.mxu0 0.0
      %885 = vmatpush2.msra.mxu0 0.0
      %886 = vmatprep.subr.mxu0 0.0
      %887 = vmatpush2.msra.mxu0 0.0
      %888 = vmatprep.subr.mxu0 0.0
      %889 = vmatpush2.msra.mxu0 0.0
      %890 = vmatprep.subr.mxu0 0.0
      %891 = vmatpush2.msra.mxu0 0.0
      %892 = vmatprep.subr.mxu0 0.0
      %893 = vmatpush2.msra.mxu0 0.0
      %894 = vmatprep.subr.mxu0 0.0
      %895 = vmatpush2.msra.mxu0 0.0
      %896 = vmatprep.subr.mxu0 0.0
      %897 = vmatpush2.msra.mxu0 0.0
      %898 = vmatprep.subr.mxu0 0.0
      %899 = vmatpush2.msra.mxu0 0.0
      %900 = vmatprep.subr.mxu0 0.0
      %901 = vmatpush2.msra.mxu0 0.0
      %902 = vmatprep.subr.mxu0 0.0
      %903 = vmatpush2.msra.mxu0 0.0
      %904 = vmatprep.subr.mxu0 0.0
      %905 = vmatpush2.msra.mxu0 0.0
      %906 = vmatprep.subr.mxu0 0.0
      %907 = vmatpush2.msra.mxu0 0.0
      %908 = vmatprep.mubr.f32.mxu0 0.0
      %909 = vmatmul.mubr.f32.gmra.mxu0 %v843
      %v910 = vpop.f32.mrf.mxu0
      %v911 = vadd.f32 0.0, %v910
      %v912 = vpop.f32.mrf.mxu0
      %913 = vdwg.mxu0
      %v914 = vmax.f32 %v911, 0.0
      %v915 = vld [vmem:[%s6] sm:$0xff]
      %v916 = vld [vmem:[%s6 + $0x8] sm:$0xff]
      %v917 = vld [vmem:[%s6 + $0x10] sm:$0xff]
      %v918 = vld [vmem:[%s6 + $0x18] sm:$0xff]
      %v919 = vld [vmem:[%s6 + $0x20] sm:$0xff]
      %v920 = vld [vmem:[%s6 + $0x28] sm:$0xff]
      %v921 = vld [vmem:[%s6 + $0x30] sm:$0xff]
      %v922 = vld [vmem:[%s6 + $0x38] sm:$0xff]
      %v923 = vld [vmem:[%s6 + $0x40] sm:$0xff]
      %v924 = vld [vmem:[%s6 + $0x48] sm:$0xff]
      %v925 = vld [vmem:[%s6 + $0x50] sm:$0xff]
      %v926 = vld [vmem:[%s6 + $0x58] sm:$0xff]
      %v927 = vld [vmem:[%s6 + $0x60] sm:$0xff]
      %v928 = vld [vmem:[%s6 + $0x68] sm:$0xff]
      %v929 = vld [vmem:[%s6 + $0x70] sm:$0xff]
      %v930 = vld [vmem:[%s6 + $0x78] sm:$0xff]
      %vm931 = vcmask 64512
      %v933 = vsel %vm931, %v915, 0
      %v936 = vsel %vm931, %v916, 0
      %v939 = vsel %vm931, %v917, 0
      %v942 = vsel %vm931, %v918, 0
      %v945 = vsel %vm931, %v919, 0
      %v948 = vsel %vm931, %v920, 0
      %v951 = vsel %vm931, %v921, 0
      %v954 = vsel %vm931, %v922, 0
      %v957 = vsel %vm931, %v923, 0
      %v960 = vsel %vm931, %v924, 0
      %v963 = vsel %vm931, %v925, 0
      %v966 = vsel %vm931, %v926, 0
      %v969 = vsel %vm931, %v927, 0
      %v972 = vsel %vm931, %v928, 0
      %v975 = vsel %vm931, %v929, 0
      %v978 = vsel %vm931, %v930, 0
      %980 = vmatprep.subr.mxu0 0.0
      %981 = vmatpush1.msra.mxu0 0.0
      %982 = vmatprep.subr.mxu0 0.0
      %983 = vmatpush1.msra.mxu0 0.0
      %984 = vmatprep.subr.mxu0 0.0
      %985 = vmatpush1.msra.mxu0 0.0
      %986 = vmatprep.subr.mxu0 0.0
      %987 = vmatpush1.msra.mxu0 0.0
      %988 = vmatprep.subr.mxu0 0.0
      %989 = vmatpush1.msra.mxu0 0.0
      %990 = vmatprep.subr.mxu0 0.0
      %991 = vmatpush1.msra.mxu0 0.0
      %992 = vmatprep.subr.mxu0 0.0
      %993 = vmatpush1.msra.mxu0 0.0
      %994 = vmatprep.subr.mxu0 0.0
      %995 = vmatpush1.msra.mxu0 0.0
      %996 = vmatprep.subr.mxu0 0.0
      %997 = vmatpush1.msra.mxu0 0.0
      %998 = vmatprep.subr.mxu0 0.0
      %999 = vmatpush1.msra.mxu0 0.0
      %1000 = vmatprep.subr.mxu0 0.0
      %1001 = vmatpush1.msra.mxu0 0.0
      %1002 = vmatprep.subr.mxu0 0.0
      %1003 = vmatpush1.msra.mxu0 0.0
      %1004 = vmatprep.subr.mxu0 0.0
      %1005 = vmatpush1.msra.mxu0 0.0
      %1006 = vmatprep.subr.mxu0 0.0
      %1007 = vmatpush1.msra.mxu0 0.0
      %1008 = vmatprep.subr.mxu0 0.0
      %1009 = vmatpush1.msra.mxu0 0.0
      %1010 = vmatprep.subr.mxu0 0.0
      %1011 = vmatpush1.msra.mxu0 %v914
      %1012 = vmatprep.subr.mxu0 0.0
      %1013 = vmatpush2.msra.mxu0 0.0
      %1014 = vmatprep.subr.mxu0 0.0
      %1015 = vmatpush2.msra.mxu0 0.0
      %1016 = vmatprep.subr.mxu0 0.0
      %1017 = vmatpush2.msra.mxu0 0.0
      %1018 = vmatprep.subr.mxu0 0.0
      %1019 = vmatpush2.msra.mxu0 0.0
      %1020 = vmatprep.subr.mxu0 0.0
      %1021 = vmatpush2.msra.mxu0 0.0
      %1022 = vmatprep.subr.mxu0 0.0
      %1023 = vmatpush2.msra.mxu0 0.0
      %1024 = vmatprep.subr.mxu0 0.0
      %1025 = vmatpush2.msra.mxu0 0.0
      %1026 = vmatprep.subr.mxu0 0.0
      %1027 = vmatpush2.msra.mxu0 0.0
      %1028 = vmatprep.subr.mxu0 0.0
      %1029 = vmatpush2.msra.mxu0 0.0
      %1030 = vmatprep.subr.mxu0 0.0
      %1031 = vmatpush2.msra.mxu0 0.0
      %1032 = vmatprep.subr.mxu0 0.0
      %1033 = vmatpush2.msra.mxu0 0.0
      %1034 = vmatprep.subr.mxu0 0.0
      %1035 = vmatpush2.msra.mxu0 0.0
      %1036 = vmatprep.subr.mxu0 0.0
      %1037 = vmatpush2.msra.mxu0 0.0
      %1038 = vmatprep.subr.mxu0 0.0
      %1039 = vmatpush2.msra.mxu0 0.0
      %1040 = vmatprep.subr.mxu0 0.0
      %1041 = vmatpush2.msra.mxu0 0.0
      %1042 = vmatprep.subr.mxu0 0.0
      %1043 = vmatpush2.msra.mxu0 0.0
      %1044 = vmatprep.mubr.f32.mxu0 0.0
      %1045 = vmatmul.mubr.f32.gmra.mxu0 %v933
      %v1046 = vpop.f32.mrf.mxu0
      %v1047 = vadd.f32 0.0, %v1046
      %v1048 = vpop.f32.mrf.mxu0
      %1049 = vmatprep.mubr.f32.mxu0 0.0
      %1050 = vmatmul.mubr.f32.gmra.mxu0 %v936
      %v1051 = vpop.f32.mrf.mxu0
      %v1052 = vadd.f32 0.0, %v1051
      %v1053 = vpop.f32.mrf.mxu0
      %1054 = vmatprep.mubr.f32.mxu0 0.0
      %1055 = vmatmul.mubr.f32.gmra.mxu0 %v939
      %v1056 = vpop.f32.mrf.mxu0
      %v1057 = vadd.f32 0.0, %v1056
      %v1058 = vpop.f32.mrf.mxu0
      %1059 = vmatprep.mubr.f32.mxu0 0.0
      %1060 = vmatmul.mubr.f32.gmra.mxu0 %v942
      %v1061 = vpop.f32.mrf.mxu0
      %v1062 = vadd.f32 0.0, %v1061
      %v1063 = vpop.f32.mrf.mxu0
      %1064 = vmatprep.mubr.f32.mxu0 0.0
      %1065 = vmatmul.mubr.f32.gmra.mxu0 %v945
      %v1066 = vpop.f32.mrf.mxu0
      %v1067 = vadd.f32 0.0, %v1066
      %v1068 = vpop.f32.mrf.mxu0
      %1069 = vmatprep.mubr.f32.mxu0 0.0
      %1070 = vmatmul.mubr.f32.gmra.mxu0 %v948
      %v1071 = vpop.f32.mrf.mxu0
      %v1072 = vadd.f32 0.0, %v1071
      %v1073 = vpop.f32.mrf.mxu0
      %1074 = vmatprep.mubr.f32.mxu0 0.0
      %1075 = vmatmul.mubr.f32.gmra.mxu0 %v951
      %v1076 = vpop.f32.mrf.mxu0
      %v1077 = vadd.f32 0.0, %v1076
      %v1078 = vpop.f32.mrf.mxu0
      %1079 = vmatprep.mubr.f32.mxu0 0.0
      %1080 = vmatmul.mubr.f32.gmra.mxu0 %v954
      %v1081 = vpop.f32.mrf.mxu0
      %v1082 = vadd.f32 0.0, %v1081
      %v1083 = vpop.f32.mrf.mxu0
      %1084 = vmatprep.mubr.f32.mxu0 0.0
      %1085 = vmatmul.mubr.f32.gmra.mxu0 %v957
      %v1086 = vpop.f32.mrf.mxu0
      %v1087 = vadd.f32 0.0, %v1086
      %v1088 = vpop.f32.mrf.mxu0
      %1089 = vmatprep.mubr.f32.mxu0 0.0
      %1090 = vmatmul.mubr.f32.gmra.mxu0 %v960
      %v1091 = vpop.f32.mrf.mxu0
      %v1092 = vadd.f32 0.0, %v1091
      %v1093 = vpop.f32.mrf.mxu0
      %1094 = vmatprep.mubr.f32.mxu0 0.0
      %1095 = vmatmul.mubr.f32.gmra.mxu0 %v963
      %v1096 = vpop.f32.mrf.mxu0
      %v1097 = vadd.f32 0.0, %v1096
      %v1098 = vpop.f32.mrf.mxu0
      %1099 = vmatprep.mubr.f32.mxu0 0.0
      %1100 = vmatmul.mubr.f32.gmra.mxu0 %v966
      %v1101 = vpop.f32.mrf.mxu0
      %v1102 = vadd.f32 0.0, %v1101
      %v1103 = vpop.f32.mrf.mxu0
      %1104 = vmatprep.mubr.f32.mxu0 0.0
      %1105 = vmatmul.mubr.f32.gmra.mxu0 %v969
      %v1106 = vpop.f32.mrf.mxu0
      %v1107 = vadd.f32 0.0, %v1106
      %v1108 = vpop.f32.mrf.mxu0
      %1109 = vmatprep.mubr.f32.mxu0 0.0
      %1110 = vmatmul.mubr.f32.gmra.mxu0 %v972
      %v1111 = vpop.f32.mrf.mxu0
      %v1112 = vadd.f32 0.0, %v1111
      %v1113 = vpop.f32.mrf.mxu0
      %1114 = vmatprep.mubr.f32.mxu0 0.0
      %1115 = vmatmul.mubr.f32.gmra.mxu0 %v975
      %v1116 = vpop.f32.mrf.mxu0
      %v1117 = vadd.f32 0.0, %v1116
      %v1118 = vpop.f32.mrf.mxu0
      %1119 = vmatprep.mubr.f32.mxu0 0.0
      %1120 = vmatmul.mubr.f32.gmra.mxu0 %v978
      %v1121 = vpop.f32.mrf.mxu0
      %v1122 = vadd.f32 0.0, %v1121
      %v1123 = vpop.f32.mrf.mxu0
      %1124 = vdwg.mxu0
      %v1125 = vxor.u32 %v1047, 2147483648
      %v1126 = vxor.u32 %v1052, 2147483648
      %v1127 = vxor.u32 %v1057, 2147483648
      %v1128 = vxor.u32 %v1062, 2147483648
      %v1129 = vxor.u32 %v1067, 2147483648
      %v1130 = vxor.u32 %v1072, 2147483648
      %v1131 = vxor.u32 %v1077, 2147483648
      %v1132 = vxor.u32 %v1082, 2147483648
      %v1133 = vxor.u32 %v1087, 2147483648
      %v1134 = vxor.u32 %v1092, 2147483648
      %v1135 = vxor.u32 %v1097, 2147483648
      %v1136 = vxor.u32 %v1102, 2147483648
      %v1137 = vxor.u32 %v1107, 2147483648
      %v1138 = vxor.u32 %v1112, 2147483648
      %v1139 = vxor.u32 %v1117, 2147483648
      %v1140 = vxor.u32 %v1122, 2147483648
      %v1141 = vmul.f32 %v1125, 1.442695
      %v1142 = vpow.pop %v1141
      %v1143 = vmul.f32 %v1126, 1.442695
      %v1144 = vpow.pop %v1143
      %v1145 = vmul.f32 %v1127, 1.442695
      %v1146 = vpow.pop %v1145
      %v1147 = vmul.f32 %v1128, 1.442695
      %v1148 = vpow.pop %v1147
      %v1149 = vmul.f32 %v1129, 1.442695
      %v1150 = vpow.pop %v1149
      %v1151 = vmul.f32 %v1130, 1.442695
      %v1152 = vpow.pop %v1151
      %v1153 = vmul.f32 %v1131, 1.442695
      %v1154 = vpow.pop %v1153
      %v1155 = vmul.f32 %v1132, 1.442695
      %v1156 = vpow.pop %v1155
      %v1157 = vmul.f32 %v1133, 1.442695
      %v1158 = vpow.pop %v1157
      %v1159 = vmul.f32 %v1134, 1.442695
      %v1160 = vpow.pop %v1159
      %v1161 = vmul.f32 %v1135, 1.442695
      %v1162 = vpow.pop %v1161
      %v1163 = vmul.f32 %v1136, 1.442695
      %v1164 = vpow.pop %v1163
      %v1165 = vmul.f32 %v1137, 1.442695
      %v1166 = vpow.pop %v1165
      %v1167 = vmul.f32 %v1138, 1.442695
      %v1168 = vpow.pop %v1167
      %v1169 = vmul.f32 %v1139, 1.442695
      %v1170 = vpow.pop %v1169
      %v1171 = vmul.f32 %v1140, 1.442695
      %v1172 = vpow.pop %v1171
      %v1173 = vadd.f32 %v1142, 1.0
      %v1174 = vadd.f32 %v1144, 1.0
      %v1175 = vadd.f32 %v1146, 1.0
      %v1176 = vadd.f32 %v1148, 1.0
      %v1177 = vadd.f32 %v1150, 1.0
      %v1178 = vadd.f32 %v1152, 1.0
      %v1179 = vadd.f32 %v1154, 1.0
      %v1180 = vadd.f32 %v1156, 1.0
      %v1181 = vadd.f32 %v1158, 1.0
      %v1182 = vadd.f32 %v1160, 1.0
      %v1183 = vadd.f32 %v1162, 1.0
      %v1184 = vadd.f32 %v1164, 1.0
      %v1185 = vadd.f32 %v1166, 1.0
      %v1186 = vadd.f32 %v1168, 1.0
      %v1187 = vadd.f32 %v1170, 1.0
      %v1188 = vadd.f32 %v1172, 1.0
      %v1189 = vrcp.pop %v1173
      %v1190 = vmul.f32 1.0, %v1189
      %v1191 = vrcp.pop %v1174
      %v1192 = vmul.f32 1.0, %v1191
      %v1193 = vrcp.pop %v1175
      %v1194 = vmul.f32 1.0, %v1193
      %v1195 = vrcp.pop %v1176
      %v1196 = vmul.f32 1.0, %v1195
      %v1197 = vrcp.pop %v1177
      %v1198 = vmul.f32 1.0, %v1197
      %v1199 = vrcp.pop %v1178
      %v1200 = vmul.f32 1.0, %v1199
      %v1201 = vrcp.pop %v1179
      %v1202 = vmul.f32 1.0, %v1201
      %v1203 = vrcp.pop %v1180
      %v1204 = vmul.f32 1.0, %v1203
      %v1205 = vrcp.pop %v1181
      %v1206 = vmul.f32 1.0, %v1205
      %v1207 = vrcp.pop %v1182
      %v1208 = vmul.f32 1.0, %v1207
      %v1209 = vrcp.pop %v1183
      %v1210 = vmul.f32 1.0, %v1209
      %v1211 = vrcp.pop %v1184
      %v1212 = vmul.f32 1.0, %v1211
      %v1213 = vrcp.pop %v1185
      %v1214 = vmul.f32 1.0, %v1213
      %v1215 = vrcp.pop %v1186
      %v1216 = vmul.f32 1.0, %v1215
      %v1217 = vrcp.pop %v1187
      %v1218 = vmul.f32 1.0, %v1217
      %v1219 = vrcp.pop %v1188
      %v1220 = vmul.f32 1.0, %v1219
      %v1221 = vadd.f32 %v827, 1.0
      %v1222 = vadd.f32 %v828, 1.0
      %v1223 = vadd.f32 %v829, 1.0
      %v1224 = vadd.f32 %v830, 1.0
      %v1225 = vadd.f32 %v831, 1.0
      %v1226 = vadd.f32 %v832, 1.0
      %v1227 = vadd.f32 %v833, 1.0
      %v1228 = vadd.f32 %v834, 1.0
      %v1229 = vadd.f32 %v835, 1.0
      %v1230 = vadd.f32 %v836, 1.0
      %v1231 = vadd.f32 %v837, 1.0
      %v1232 = vadd.f32 %v838, 1.0
      %v1233 = vadd.f32 %v839, 1.0
      %v1234 = vadd.f32 %v840, 1.0
      %v1235 = vadd.f32 %v841, 1.0
      %v1236 = vadd.f32 %v842, 1.0
      %v1237 = vmul.f32 %v1221, %v1190
      %v1238 = vmul.f32 %v1222, %v1192
      %v1239 = vmul.f32 %v1223, %v1194
      %v1240 = vmul.f32 %v1224, %v1196
      %v1241 = vmul.f32 %v1225, %v1198
      %v1242 = vmul.f32 %v1226, %v1200
      %v1243 = vmul.f32 %v1227, %v1202
      %v1244 = vmul.f32 %v1228, %v1204
      %v1245 = vmul.f32 %v1229, %v1206
      %v1246 = vmul.f32 %v1230, %v1208
      %v1247 = vmul.f32 %v1231, %v1210
      %v1248 = vmul.f32 %v1232, %v1212
      %v1249 = vmul.f32 %v1233, %v1214
      %v1250 = vmul.f32 %v1234, %v1216
      %v1251 = vmul.f32 %v1235, %v1218
      %v1252 = vmul.f32 %v1236, %v1220
      %1253 = vst [vmem:[%s506] sm:$0xff] %v1237
      %1254 = vst [vmem:[%s506 + $0x8] sm:$0xff] %v1238
      %1255 = vst [vmem:[%s506 + $0x10] sm:$0xff] %v1239
      %1256 = vst [vmem:[%s506 + $0x18] sm:$0xff] %v1240
      %1257 = vst [vmem:[%s506 + $0x20] sm:$0xff] %v1241
      %1258 = vst [vmem:[%s506 + $0x28] sm:$0xff] %v1242
      %1259 = vst [vmem:[%s506 + $0x30] sm:$0xff] %v1243
      %1260 = vst [vmem:[%s506 + $0x38] sm:$0xff] %v1244
      %1261 = vst [vmem:[%s506 + $0x40] sm:$0xff] %v1245
      %1262 = vst [vmem:[%s506 + $0x48] sm:$0xff] %v1246
      %1263 = vst [vmem:[%s506 + $0x50] sm:$0xff] %v1247
      %1264 = vst [vmem:[%s506 + $0x58] sm:$0xff] %v1248
      %1265 = vst [vmem:[%s506 + $0x60] sm:$0xff] %v1249
      %1266 = vst [vmem:[%s506 + $0x68] sm:$0xff] %v1250
      %1267 = vst [vmem:[%s506 + $0x70] sm:$0xff] %v1251
      %1268 = vst [vmem:[%s506 + $0x78] sm:$0xff] %v1252
      %p1269 = scmp.lt.s32.totalorder %s25, 1
      %s1270 = scalar_select %p1269, %s25, 1
      %p1271 = scmp.lt.s32.totalorder %s26, 0
      %s1272 = scalar_select %p1271, %s26, 0
      %s1273 = smul.addr %s1270, 16
      %s1274 = sadd.s32 %s1272, %s1273
      %s1275 = smul.addr %s1274, 8
      %s1276 = scalar_lea.vmem %s7, %s1275
      %p1277 = scmp.lt.s32.totalorder %s25, 1
      %s1278 = scalar_select %p1277, %s25, 1
      %p1279 = scmp.lt.s32.totalorder %s26, 0
      %s1280 = scalar_select %p1279, %s26, 0
      %s1281 = smul.addr %s1278, 16
      %s1282 = sadd.s32 %s1280, %s1281
      %s1283 = smul.addr %s1282, 8
      %s1284 = scalar_lea.vmem %s8, %s1283
      %p1285 = scmp.lt.s32.totalorder %s25, 1
      %s1286 = scalar_select %p1285, %s25, 1
      %p1287 = scmp.lt.s32.totalorder %s26, 0
      %s1288 = scalar_select %p1287, %s26, 0
      %s1289 = smul.addr %s1286, 16
      %s1290 = sadd.s32 %s1288, %s1289
      %s1291 = smul.addr %s1290, 8
      %s1292 = scalar_lea.vmem %s9, %s1291
      // Predicated region
      $region49: #{senet_shared_forward.3} parent=47 // pred_check
        %p1293 = pneg %p231
      $region50: #{senet_shared_forward.3} parent=47 // pred_check_branch
        %1295 = sbr.rel (%p1293) target = $region52
      $region51: #{senet_shared_forward.3} parent=47 // pred_region
        _
      $region52: #{senet_shared_forward.3} parent=47 // pred_fallthru
        _
      // Predicated region
      $region53: #{senet_shared_forward.3} parent=47 // pred_check
        %p1296 = pneg %p259
      $region54: #{senet_shared_forward.3} parent=47 // pred_check_branch
        %1298 = sbr.rel (%p1296) target = $region56
      $region55: #{senet_shared_forward.3} parent=47 // pred_region
        _
      $region56: #{senet_shared_forward.3} parent=47 // pred_fallthru
        _
      // Predicated region
      $region57: #{senet_shared_forward.3} parent=47 // pred_check
        %p1299 = pneg %p287
      $region58: #{senet_shared_forward.3} parent=47 // pred_check_branch
        %1301 = sbr.rel (%p1299) target = $region60
      $region59: #{senet_shared_forward.3} parent=47 // pred_region
        _
      $region60: #{senet_shared_forward.3} parent=47 // pred_fallthru
        _
    $region48: #{senet_shared_forward.3} parent=5 // pred_fallthru
      _
    %p1302 = scmp.le.s32.totalorder 2, %s16
    // Predicated region
    $region61: #{senet_shared_forward.3} parent=5 // pred_check
      %p1303 = pneg %p1302
    $region62: #{senet_shared_forward.3} parent=5 // pred_check_branch
      %1305 = sbr.rel (%p1303) target = $region64
    $region63: #{senet_shared_forward.3} parent=5 // pred_region
      %s1306 = ssub.s32 %s16, 2
      // Predicated region
      $region65: #{senet_shared_forward.3} parent=63 // pred_check
        %p1307 = pneg %p237
      $region66: #{senet_shared_forward.3} parent=63 // pred_check_branch
        %1309 = sbr.rel (%p1307) target = $region68
      $region67: #{senet_shared_forward.3} parent=63 // pred_region
        %p1310 = scmp.lt.s32.totalorder %s27, 1
        %s1311 = scalar_select %p1310, %s27, 1
        %p1312 = scmp.lt.s32.totalorder %s28, 0
        %s1313 = scalar_select %p1312, %s28, 0
        %s1314 = smul.addr %s1311, 16
        %s1315 = sadd.s32 %s1313, %s1314
        %s1316 = smul.addr %s1315, 8
        %s1317 = scalar_lea.vmem %s7, %s1316
      $region68: #{senet_shared_forward.3} parent=63 // pred_fallthru
        _
      // Predicated region
      $region69: #{senet_shared_forward.3} parent=63 // pred_check
        %p1318 = pneg %p265
      $region70: #{senet_shared_forward.3} parent=63 // pred_check_branch
        %1320 = sbr.rel (%p1318) target = $region72
      $region71: #{senet_shared_forward.3} parent=63 // pred_region
        %p1321 = scmp.lt.s32.totalorder %s27, 1
        %s1322 = scalar_select %p1321, %s27, 1
        %p1323 = scmp.lt.s32.totalorder %s28, 0
        %s1324 = scalar_select %p1323, %s28, 0
        %s1325 = smul.addr %s1322, 16
        %s1326 = sadd.s32 %s1324, %s1325
        %s1327 = smul.addr %s1326, 8
        %s1328 = scalar_lea.vmem %s8, %s1327
      $region72: #{senet_shared_forward.3} parent=63 // pred_fallthru
        _
      // Predicated region
      $region73: #{senet_shared_forward.3} parent=63 // pred_check
        %p1329 = pneg %p293
      $region74: #{senet_shared_forward.3} parent=63 // pred_check_branch
        %1331 = sbr.rel (%p1329) target = $region76
      $region75: #{senet_shared_forward.3} parent=63 // pred_region
        %p1332 = scmp.lt.s32.totalorder %s27, 1
        %s1333 = scalar_select %p1332, %s27, 1
        %p1334 = scmp.lt.s32.totalorder %s28, 0
        %s1335 = scalar_select %p1334, %s28, 0
        %s1336 = smul.addr %s1333, 16
        %s1337 = sadd.s32 %s1335, %s1336
        %s1338 = smul.addr %s1337, 8
        %s1339 = scalar_lea.vmem %s9, %s1338
      $region76: #{senet_shared_forward.3} parent=63 // pred_fallthru
        _
    $region64: #{senet_shared_forward.3} parent=5 // pred_fallthru
      _
  $region6: #{senet_shared_forward.3} parent=0 // loop_footer
    %s20 = sadd.s32 1, %s16
  $region7: #{senet_shared_forward.3} parent=0 // loop_footer_branch
    %15 = sbr.rel target = $region3
  $region8: #{senet_shared_forward.3} parent=0 // loop_exit
    _

</llo_original>
